<compile_context>
chip_gen: v5e
topology: v5e:2x2
jax: 0.10.0
libtpu: 0.0.40
codegen_flags: <defaults>
</compile_context>

<pallas_src>
import math

import jax
import jax.numpy as jnp
from jax.experimental import pallas as pl
from jax.experimental.pallas import tpu as pltpu


def _gelu_exact(x):
    # PyTorch F.gelu default (exact, erf-based)
    return 0.5 * x * (1.0 + jax.lax.erf(x * (1.0 / math.sqrt(2.0))))


# ----------------------------------------------------------------------------
# Fused FF kernel: (x @ W1v + b1v) * gelu(x @ W1g + b1g) @ W2 + b2
# x tile: (tm, D) f32 (cast to bf16 in-kernel); weights bf16; biases f32.
# ----------------------------------------------------------------------------
def _ff_kernel(x_ref, w1v_ref, w1g_ref, b1v_ref, b1g_ref, w2_ref, b2_ref, o_ref):
    x = x_ref[...].astype(jnp.bfloat16)                                # in-kernel cast (VPU, hidden under MXU)
    hv = jnp.dot(x, w1v_ref[...], preferred_element_type=jnp.float32) + b1v_ref[...]
    hg = jnp.dot(x, w1g_ref[...], preferred_element_type=jnp.float32) + b1g_ref[...]
    y = hv * _gelu_exact(hg)                                           # GEGLU in f32
    out = jnp.dot(y.astype(jnp.bfloat16), w2_ref[...],
                  preferred_element_type=jnp.float32) + b2_ref[...]
    o_ref[...] = out.astype(o_ref.dtype)


def prepare_params(params):
    """One-time cast/layout of weights (call once at init, NOT per forward).

    w1v / w1g are the first / second output halves of PyTorch's Linear(dim, 2*dim_ff)
    weight, stored transposed to (in, out) so the kernel computes x @ W.
    """
    F_dim, D = params["w2"].shape
    return dict(
        w1v=params["w1v"].astype(jnp.bfloat16),
        w1g=params["w1g"].astype(jnp.bfloat16),
        w2=params["w2"].astype(jnp.bfloat16),
        b1v=params["b1v"].reshape(1, F_dim).astype(jnp.float32),
        b1g=params["b1g"].reshape(1, F_dim).astype(jnp.float32),
        b2=params["b2"].reshape(1, D).astype(jnp.float32),
    )


def cached_feedforward(x, kp, *, block_m=512, min_steps=4, out_dtype=jnp.float32,
                       single_buffer_weights=False, rollout=False):
    """rollout=False forward of CachedFeedForward. x: (B, N, D) float32.

    kp: output of prepare_params(). Set single_buffer_weights=True on v7x
    (64 MiB/TC VMEM) to single-buffer the grid-invariant weight blocks.
    Set out_dtype=jnp.bfloat16 if the consumer tolerates it (halves output HBM).
    """
    assert not rollout, "rollout=True path not implemented (see TODO at top)"
    B, N, D = x.shape
    F_dim = kp["w2"].shape[0]
    M = B * N

    # --- row tile: multiple of 128; keep >= min_steps grid steps when M allows ---
    tm = max(128, (block_m // 128) * 128)
    if M >= min_steps * 128:
        tm = min(tm, (M // min_steps // 128) * 128)     # pipeline depth / v7x 2-TC split
    tm = min(tm, pl.cdiv(M, 128) * 128)                 # don't over-allocate tiny problems

    x2 = x.reshape(M, D)                                # free reshape; stays f32 in HBM

    # --- VMEM budget derived from actual need (instead of a flat 64 MiB) ---
    f32b, bf16b = 4, 2
    out_b = jnp.dtype(out_dtype).itemsize
    weight_bytes = (2 * D * F_dim + F_dim * D) * bf16b + (2 * F_dim + D) * f32b
    w_bufs = 1 if single_buffer_weights else 2
    act_bytes = 2 * tm * D * f32b                       # double-buffered x tiles
    outb = 2 * tm * D * out_b                           # double-buffered out tiles
    inter = 3 * tm * F_dim * f32b                       # hv / hg / y f32 intermediates
    vmem_limit = w_bufs * weight_bytes + act_bytes + outb + inter + (8 << 20)
    vmem_limit = int(min(max(vmem_limit, 16 << 20), 128 << 20))

    row = lambda i: (i, 0)
    if single_buffer_weights:
        # Grid-invariant blocks only need one buffer (halves resident-weight VMEM on v7x).
        const = lambda shape: pl.BlockSpec(shape, lambda i: (0, 0),
                                           pipeline_mode=pl.Buffered(1))
    else:
        const = lambda shape: pl.BlockSpec(shape, lambda i: (0, 0))

    out = pl.pallas_call(
        _ff_kernel,
        out_shape=jax.ShapeDtypeStruct((M, D), out_dtype),
        grid=(pl.cdiv(M, tm),),
        in_specs=[
            pl.BlockSpec((tm, D), row),                 # x rows (f32)
            const((D, F_dim)),                          # W1 value half (bf16, resident)
            const((D, F_dim)),                          # W1 gate half  (bf16, resident)
            const((1, F_dim)),                          # b1 value half (f32)
            const((1, F_dim)),                          # b1 gate half  (f32)
            const((F_dim, D)),                          # W2 (bf16, resident)
            const((1, D)),                              # b2 (f32)
        ],
        out_specs=pl.BlockSpec((tm, D), row),
        compiler_params=pltpu.CompilerParams(
            dimension_semantics=("parallel",),
            vmem_limit_bytes=vmem_limit,
        ),
    )(x2, kp["w1v"], kp["w1g"], kp["b1v"], kp["b1g"], kp["w2"], kp["b2"])

    return out.reshape(B, N, D)


# ----------------------------------------------------------------------------
# Pure-JAX references
# ----------------------------------------------------------------------------
def _ref_f32(x, p):
    # Exact PyTorch-semantics forward in f32 (Dropout p=0.0 is identity).
    hv = x @ p["w1v"] + p["b1v"]
    hg = x @ p["w1g"] + p["b1g"]
    y = hv * _gelu_exact(hg)
    return y @ p["w2"] + p["b2"]


def _ref_bf16(x, p):
    # Numerics-matched reference (bf16 MXU operands, f32 accumulation).
    bf = jnp.bfloat16
    hv = jnp.dot(x.astype(bf), p["w1v"].astype(bf),
                 preferred_element_type=jnp.float32) + p["b1v"]
    hg = jnp.dot(x.astype(bf), p["w1g"].astype(bf),
                 preferred_element_type=jnp.float32) + p["b1g"]
    y = hv * _gelu_exact(hg)
    return jnp.dot(y.astype(bf), p["w2"].astype(bf),
                   preferred_element_type=jnp.float32) + p["b2"]


# ----------------------------------------------------------------------------
# Demo / correctness check
# ----------------------------------------------------------------------------
if __name__ == "__main__":
    B, N = 4, 128
    dim = 128
    dim_feedforward = 128   # PyTorch default; multiple of 128 keeps lanes dense

    key = jax.random.PRNGKey(0)
    kx, k1, k2, k3, k4, k5, k6 = jax.random.split(key, 7)

    x = jax.random.normal(kx, (B, N, dim), jnp.float32)
    params = dict(
        w1v=0.1 * jax.random.normal(k1, (dim, dim_feedforward), jnp.float32),
        w1g=0.1 * jax.random.normal(k2, (dim, dim_feedforward), jnp.float32),
        b1v=0.02 * jax.random.normal(k3, (dim_feedforward,), jnp.float32),
        b1g=0.02 * jax.random.normal(k4, (dim_feedforward,), jnp.float32),
        w2=0.1 * jax.random.normal(k5, (dim_feedforward, dim), jnp.float32),
        b2=0.02 * jax.random.normal(k6, (dim,), jnp.float32),
    )

    kp = prepare_params(params)   # one-time weight cast (not per call)

    out = jax.block_until_ready(cached_feedforward(x, kp, block_m=512))
    assert out.shape == (B, N, dim)

    ref_bf = jax.block_until_ready(_ref_bf16(x, params))
    ref_f32 = jax.block_until_ready(_ref_f32(x, params))

    # Tight check against the numerics-matched reference (proves kernel math is right).
    err_bf = float(jnp.max(jnp.abs(out - ref_bf)))
    assert jnp.allclose(out, ref_bf, atol=2e-3, rtol=2e-3), err_bf
    # Looser check against full-f32 PyTorch semantics (bf16 matmul precision tradeoff).
    err_f32 = float(jnp.max(jnp.abs(out - ref_f32)))
    assert jnp.allclose(out, ref_f32, atol=8e-2, rtol=8e-2), err_f32

    print("KERNEL_OK")
</pallas_src>

<mosaic_0001>
module attributes {stable_mosaic.version = 11 : i64} {
  func.func @_ff_kernel(%arg0: i32, %arg1: memref<128x128xf32, #tpu.memory_space<vmem>>, %arg2: memref<128x128xbf16, #tpu.memory_space<vmem>>, %arg3: memref<128x128xbf16, #tpu.memory_space<vmem>>, %arg4: memref<1x128xf32, #tpu.memory_space<vmem>>, %arg5: memref<1x128xf32, #tpu.memory_space<vmem>>, %arg6: memref<128x128xbf16, #tpu.memory_space<vmem>>, %arg7: memref<1x128xf32, #tpu.memory_space<vmem>>, %arg8: memref<128x128xf32, #tpu.memory_space<vmem>>) attributes {dimension_semantics = [#tpu.dimension_semantics<parallel>], iteration_bounds = array<i64: 4>, scalar_prefetch = 0 : i64, scratch_operands = 0 : i64, tpu.core_type = #tpu.core_type<tc>, window_params = [{transform_indices = @transform_0, window_bounds = array<i64: 128, 128>}, {pipeline_mode = #tpu.pipeline_mode<synchronous>, transform_indices = @transform_1, window_bounds = array<i64: 128, 128>}, {pipeline_mode = #tpu.pipeline_mode<synchronous>, transform_indices = @transform_2, window_bounds = array<i64: 128, 128>}, {pipeline_mode = #tpu.pipeline_mode<synchronous>, transform_indices = @transform_3, window_bounds = array<i64: 1, 128>}, {pipeline_mode = #tpu.pipeline_mode<synchronous>, transform_indices = @transform_4, window_bounds = array<i64: 1, 128>}, {pipeline_mode = #tpu.pipeline_mode<synchronous>, transform_indices = @transform_5, window_bounds = array<i64: 128, 128>}, {pipeline_mode = #tpu.pipeline_mode<synchronous>, transform_indices = @transform_6, window_bounds = array<i64: 1, 128>}, {transform_indices = @transform_7, window_bounds = array<i64: 128, 128>}]} {
    %c0 = arith.constant 0 : index
    %c0_0 = arith.constant 0 : index
    %0 = vector.load %arg1[%c0, %c0_0] : memref<128x128xf32, #tpu.memory_space<vmem>>, vector<128x128xf32>
    %1 = arith.truncf %0 : vector<128x128xf32> to vector<128x128xbf16>
    %c0_1 = arith.constant 0 : index
    %c0_2 = arith.constant 0 : index
    %2 = vector.load %arg2[%c0_1, %c0_2] : memref<128x128xbf16, #tpu.memory_space<vmem>>, vector<128x128xbf16>
    %cst = arith.constant dense<0.000000e+00> : vector<128x128xf32>
    %3 = tpu.matmul %1, %2, %cst {dimension_numbers = #tpu.dot_dimension_numbers<[1], [0], [0], [1], [0, 0, 1, 1], [], []>} : vector<128x128xbf16>, vector<128x128xbf16>, vector<128x128xf32> -> vector<128x128xf32>
    %c0_3 = arith.constant 0 : index
    %c0_4 = arith.constant 0 : index
    %4 = vector.load %arg4[%c0_3, %c0_4] : memref<1x128xf32, #tpu.memory_space<vmem>>, vector<1x128xf32>
    %5 = vector.broadcast %4 : vector<1x128xf32> to vector<128x128xf32>
    %6 = arith.addf %3, %5 : vector<128x128xf32>
    %c0_5 = arith.constant 0 : index
    %c0_6 = arith.constant 0 : index
    %7 = vector.load %arg3[%c0_5, %c0_6] : memref<128x128xbf16, #tpu.memory_space<vmem>>, vector<128x128xbf16>
    %cst_7 = arith.constant dense<0.000000e+00> : vector<128x128xf32>
    %8 = tpu.matmul %1, %7, %cst_7 {dimension_numbers = #tpu.dot_dimension_numbers<[1], [0], [0], [1], [0, 0, 1, 1], [], []>} : vector<128x128xbf16>, vector<128x128xbf16>, vector<128x128xf32> -> vector<128x128xf32>
    %c0_8 = arith.constant 0 : index
    %c0_9 = arith.constant 0 : index
    %9 = vector.load %arg5[%c0_8, %c0_9] : memref<1x128xf32, #tpu.memory_space<vmem>>, vector<1x128xf32>
    %10 = vector.broadcast %9 : vector<1x128xf32> to vector<128x128xf32>
    %11 = arith.addf %8, %10 : vector<128x128xf32>
    %cst_10 = arith.constant 5.000000e-01 : f32
    %12 = vector.broadcast %cst_10 : f32 to vector<128x128xf32>
    %13 = arith.mulf %12, %11 : vector<128x128xf32>
    %cst_11 = arith.constant 0.707106769 : f32
    %14 = vector.broadcast %cst_11 : f32 to vector<128x128xf32>
    %15 = arith.mulf %11, %14 : vector<128x128xf32>
    %16 = math.erf %15 : vector<128x128xf32>
    %cst_12 = arith.constant 1.000000e+00 : f32
    %17 = vector.broadcast %cst_12 : f32 to vector<128x128xf32>
    %18 = arith.addf %17, %16 : vector<128x128xf32>
    %19 = arith.mulf %13, %18 : vector<128x128xf32>
    %20 = arith.mulf %6, %19 : vector<128x128xf32>
    %21 = arith.truncf %20 : vector<128x128xf32> to vector<128x128xbf16>
    %c0_13 = arith.constant 0 : index
    %c0_14 = arith.constant 0 : index
    %22 = vector.load %arg6[%c0_13, %c0_14] : memref<128x128xbf16, #tpu.memory_space<vmem>>, vector<128x128xbf16>
    %cst_15 = arith.constant dense<0.000000e+00> : vector<128x128xf32>
    %23 = tpu.matmul %21, %22, %cst_15 {dimension_numbers = #tpu.dot_dimension_numbers<[1], [0], [0], [1], [0, 0, 1, 1], [], []>} : vector<128x128xbf16>, vector<128x128xbf16>, vector<128x128xf32> -> vector<128x128xf32>
    %c0_16 = arith.constant 0 : index
    %c0_17 = arith.constant 0 : index
    %24 = vector.load %arg7[%c0_16, %c0_17] : memref<1x128xf32, #tpu.memory_space<vmem>>, vector<1x128xf32>
    %25 = vector.broadcast %24 : vector<1x128xf32> to vector<128x128xf32>
    %26 = arith.addf %23, %25 : vector<128x128xf32>
    %c0_18 = arith.constant 0 : index
    %c0_19 = arith.constant 0 : index
    %27 = vector.load %arg8[%c0_18, %c0_19] : memref<128x128xf32, #tpu.memory_space<vmem>>, vector<128x128xf32>
    tpu.vector_store %arg8[%c0_18, %c0_19], %26 {strides = array<i32>} : memref<128x128xf32, #tpu.memory_space<vmem>>, vector<128x128xf32>,
    return
  }
  func.func @transform_0(%arg0: i32) -> (i32, i32) {
    %c0_i32 = arith.constant 0 : i32
    %c0_i32_0 = arith.constant 0 : i32
    return %arg0, %c0_i32 : i32, i32
  }
  func.func @transform_1(%arg0: i32) -> (i32, i32) {
    %c0_i32 = arith.constant 0 : i32
    %c0_i32_0 = arith.constant 0 : i32
    %c0_i32_1 = arith.constant 0 : i32
    return %c0_i32, %c0_i32_0 : i32, i32
  }
  func.func @transform_2(%arg0: i32) -> (i32, i32) {
    %c0_i32 = arith.constant 0 : i32
    %c0_i32_0 = arith.constant 0 : i32
    %c0_i32_1 = arith.constant 0 : i32
    return %c0_i32, %c0_i32_0 : i32, i32
  }
  func.func @transform_3(%arg0: i32) -> (i32, i32) {
    %c0_i32 = arith.constant 0 : i32
    %c0_i32_0 = arith.constant 0 : i32
    %c0_i32_1 = arith.constant 0 : i32
    return %c0_i32, %c0_i32_0 : i32, i32
  }
  func.func @transform_4(%arg0: i32) -> (i32, i32) {
    %c0_i32 = arith.constant 0 : i32
    %c0_i32_0 = arith.constant 0 : i32
    %c0_i32_1 = arith.constant 0 : i32
    return %c0_i32, %c0_i32_0 : i32, i32
  }
  func.func @transform_5(%arg0: i32) -> (i32, i32) {
    %c0_i32 = arith.constant 0 : i32
    %c0_i32_0 = arith.constant 0 : i32
    %c0_i32_1 = arith.constant 0 : i32
    return %c0_i32, %c0_i32_0 : i32, i32
  }
  func.func @transform_6(%arg0: i32) -> (i32, i32) {
    %c0_i32 = arith.constant 0 : i32
    %c0_i32_0 = arith.constant 0 : i32
    %c0_i32_1 = arith.constant 0 : i32
    return %c0_i32, %c0_i32_0 : i32, i32
  }
  func.func @transform_7(%arg0: i32) -> (i32, i32) {
    %c0_i32 = arith.constant 0 : i32
    %c0_i32_0 = arith.constant 0 : i32
    return %arg0, %c0_i32 : i32, i32
  }
}

</mosaic_0001>

<llo_original>
// kernel: tpu_custom_call.1
$region0: #{tpu_custom_call.1}
  #allocation0 [shape = 'u32[]', space=smem, size = 0x4, offset = 0x4, fixed_abs, tag = 'smem constant byte address 0x4 - core index']
  #allocation1 [shape = 'u32[72,128]{1,0:T(1,128)}', space=vmem, size = 0x9000, scoped, tag = 'internal scratch']
  %s0 = inlined_call_operand.hbm [shape: f32[512,128], index: 0, kind: input, shape index: {}]
  %s1 = inlined_call_operand.hbm [shape: bf16[128,128], index: 1, kind: input, shape index: {}]
  %s2 = inlined_call_operand.hbm [shape: bf16[128,128], index: 2, kind: input, shape index: {}]
  %s3 = inlined_call_operand.vmem [shape: f32[1,128], index: 3, kind: input, shape index: {}]
  %s4 = inlined_call_operand.vmem [shape: f32[1,128], index: 4, kind: input, shape index: {}]
  %s5 = inlined_call_operand.hbm [shape: bf16[128,128], index: 5, kind: input, shape index: {}]
  %s6 = inlined_call_operand.vmem [shape: f32[1,128], index: 6, kind: input, shape index: {}]
  %s7 = inlined_call_operand.hbm [shape: f32[512,128], index: 7, kind: output, shape index: {}]
  %s8 = sld [smem:[#allocation0]]
  $region77: #{tpu_custom_call.1} parent=0
    _
  %s10 = ssub.s32 1, %s8
  %s11 = scalar_select 0, %s10, %s8
  $region1: #{tpu_custom_call.1} parent=0
    #allocation2 [shape = 'u8[131072]{0}', space=vmem, size = 0x20000, scoped, tag = 'input window, operand 0']
    #allocation3 [shape = 's32[2]{0}', space=sflag, size = 0x8, scoped, tag = 'scoped memory for tpu_custom_call.1']
    #allocation4 [shape = 's32[2]{0}', space=sflag, size = 0x8, scoped, tag = 'scoped memory for tpu_custom_call.1']
    #allocation5 [shape = 'u8[32768]{0}', space=vmem, size = 0x8000, scoped, tag = 'input window, operand 1, single buffered']
    #allocation6 [shape = 's32[1]{0}', space=sflag, size = 0x4, scoped, tag = 'scoped memory for tpu_custom_call.1']
    #allocation7 [shape = 'u8[32768]{0}', space=vmem, size = 0x8000, scoped, tag = 'input window, operand 2, single buffered']
    #allocation8 [shape = 'u8[32768]{0}', space=vmem, size = 0x8000, scoped, tag = 'input window, operand 5, single buffered']
    #allocation9 [shape = 's32[1]{0}', space=sflag, size = 0x4, scoped, tag = 'scoped memory for tpu_custom_call.1']
    #allocation10 [shape = 'u8[131072]{0}', space=vmem, size = 0x20000, scoped, tag = 'output window, operand 0']
    %12 = vsyncpa [#allocation3], 0
    %s13 = scalar_lea.sflag [#allocation3], 1
    %14 = vsyncpa %s13, 0
    %15 = vsyncpa [#allocation6], 0
    %16 = vsyncpa [#allocation9], 0
    %17 = vsyncpa [#allocation4], 0
    %s18 = scalar_lea.sflag [#allocation4], 1
    %19 = vsyncpa %s18, 0
    loop: start=0, step=1, limit=6
    $region2: #{tpu_custom_call.1} parent=1 // loop_pre_header
      _
    $region3: #{tpu_custom_call.1} parent=1 // loop_header
      %s21 = sphi 0, %s25
      %p22 = scmp.ge.s32.totalorder %s21, 6
      %s31 = sphi 0, %s33
      %s34 = sphi 0, %s31
      %s35 = sphi 0, %s34
      %s51 = sphi 0, %s35
      %s55 = sphi 0, %s55
      %s57 = sphi 0, %s55
      %s58 = sphi 0, %s57
      %s72 = sphi 0, %s58
      %s76 = sphi 0, %s76
      %s78 = sphi 0, %s76
      %s79 = sphi 0, %s78
      %s93 = sphi 0, %s79
      %s97 = sphi 0, %s97
      %s99 = sphi 0, %s97
      %s100 = sphi 0, %s99
      %s114 = sphi 0, %s100
      %s118 = sphi 0, %s118
      %s120 = sphi 0, %s118
      %s121 = sphi 0, %s120
      %s135 = sphi 0, %s121
      %s139 = sphi 0, %s139
      %s141 = sphi 0, %s139
      %s142 = sphi 0, %s141
      %s156 = sphi 0, %s142
      %s160 = sphi 0, %s160
      %s162 = sphi 0, %s160
      %s163 = sphi 0, %s162
      %s177 = sphi 0, %s163
      %s183 = sphi 0, %s185
      %s186 = sphi 0, %s183
      %s187 = sphi 0, %s186
      %s203 = sphi 0, %s187
    $region4: #{tpu_custom_call.1} parent=1 // loop_header_branch
      %24 = sbr.rel (%p22) target = $region8
    $region5: #{tpu_custom_call.1} parent=1 // loop_body
      %s26 = ssub.s32 %s21, 1
      %s27 = ssub.s32 %s21, 2
      %s28 = sadd.s32 %s21, 1
      %s29 = ssub.s32 %s21, %s28
      %p30 = scmp.eq.s32.totalorder %s29, 0
      %s32 = sadd.s32 %s31, 1
      %s33 = scalar_select %p30, %s31, %s32
      %p36 = pneg %p30
      %p37 = scmp.eq.s32.totalorder %s21, 3
      %p38 = por %p36, %p37
      %p39 = scmp.ne.s32.totalorder %s31, %s34
      %p40 = scmp.eq.s32.totalorder %s21, 0
      %p41 = por %p39, %p40
      %p42 = scmp.ne.s32.totalorder %s31, %s34
      %p43 = scmp.eq.s32.totalorder %s26, 3
      %p44 = por %p42, %p43
      %p45 = scmp.ne.s32.totalorder %s34, %s35
      %p46 = scmp.eq.s32.totalorder %s26, 0
      %p47 = por %p45, %p46
      %p48 = scmp.ne.s32.totalorder %s34, %s35
      %p49 = scmp.eq.s32.totalorder %s27, 3
      %p50 = por %p48, %p49
      %p52 = scmp.ne.s32.totalorder %s35, %s51
      %p53 = scmp.eq.s32.totalorder %s27, 0
      %p54 = por %p52, %p53
      %s56 = sadd.s32 %s55, 1
      %p59 = scmp.eq.s32.totalorder %s21, 3
      %p60 = scmp.ne.s32.totalorder %s55, %s57
      %p61 = scmp.eq.s32.totalorder %s21, 0
      %p62 = por %p60, %p61
      %p63 = scmp.ne.s32.totalorder %s55, %s57
      %p64 = scmp.eq.s32.totalorder %s26, 3
      %p65 = por %p63, %p64
      %p66 = scmp.ne.s32.totalorder %s57, %s58
      %p67 = scmp.eq.s32.totalorder %s26, 0
      %p68 = por %p66, %p67
      %p69 = scmp.ne.s32.totalorder %s57, %s58
      %p70 = scmp.eq.s32.totalorder %s27, 3
      %p71 = por %p69, %p70
      %p73 = scmp.ne.s32.totalorder %s58, %s72
      %p74 = scmp.eq.s32.totalorder %s27, 0
      %p75 = por %p73, %p74
      %s77 = sadd.s32 %s76, 1
      %p80 = scmp.eq.s32.totalorder %s21, 3
      %p81 = scmp.ne.s32.totalorder %s76, %s78
      %p82 = scmp.eq.s32.totalorder %s21, 0
      %p83 = por %p81, %p82
      %p84 = scmp.ne.s32.totalorder %s76, %s78
      %p85 = scmp.eq.s32.totalorder %s26, 3
      %p86 = por %p84, %p85
      %p87 = scmp.ne.s32.totalorder %s78, %s79
      %p88 = scmp.eq.s32.totalorder %s26, 0
      %p89 = por %p87, %p88
      %p90 = scmp.ne.s32.totalorder %s78, %s79
      %p91 = scmp.eq.s32.totalorder %s27, 3
      %p92 = por %p90, %p91
      %p94 = scmp.ne.s32.totalorder %s79, %s93
      %p95 = scmp.eq.s32.totalorder %s27, 0
      %p96 = por %p94, %p95
      %s98 = sadd.s32 %s97, 1
      %p101 = scmp.eq.s32.totalorder %s21, 3
      %p102 = scmp.ne.s32.totalorder %s97, %s99
      %p103 = scmp.eq.s32.totalorder %s21, 0
      %p104 = por %p102, %p103
      %p105 = scmp.ne.s32.totalorder %s97, %s99
      %p106 = scmp.eq.s32.totalorder %s26, 3
      %p107 = por %p105, %p106
      %p108 = scmp.ne.s32.totalorder %s99, %s100
      %p109 = scmp.eq.s32.totalorder %s26, 0
      %p110 = por %p108, %p109
      %p111 = scmp.ne.s32.totalorder %s99, %s100
      %p112 = scmp.eq.s32.totalorder %s27, 3
      %p113 = por %p111, %p112
      %p115 = scmp.ne.s32.totalorder %s100, %s114
      %p116 = scmp.eq.s32.totalorder %s27, 0
      %p117 = por %p115, %p116
      %s119 = sadd.s32 %s118, 1
      %p122 = scmp.eq.s32.totalorder %s21, 3
      %p123 = scmp.ne.s32.totalorder %s118, %s120
      %p124 = scmp.eq.s32.totalorder %s21, 0
      %p125 = por %p123, %p124
      %p126 = scmp.ne.s32.totalorder %s118, %s120
      %p127 = scmp.eq.s32.totalorder %s26, 3
      %p128 = por %p126, %p127
      %p129 = scmp.ne.s32.totalorder %s120, %s121
      %p130 = scmp.eq.s32.totalorder %s26, 0
      %p131 = por %p129, %p130
      %p132 = scmp.ne.s32.totalorder %s120, %s121
      %p133 = scmp.eq.s32.totalorder %s27, 3
      %p134 = por %p132, %p133
      %p136 = scmp.ne.s32.totalorder %s121, %s135
      %p137 = scmp.eq.s32.totalorder %s27, 0
      %p138 = por %p136, %p137
      %s140 = sadd.s32 %s139, 1
      %p143 = scmp.eq.s32.totalorder %s21, 3
      %p144 = scmp.ne.s32.totalorder %s139, %s141
      %p145 = scmp.eq.s32.totalorder %s21, 0
      %p146 = por %p144, %p145
      %p147 = scmp.ne.s32.totalorder %s139, %s141
      %p148 = scmp.eq.s32.totalorder %s26, 3
      %p149 = por %p147, %p148
      %p150 = scmp.ne.s32.totalorder %s141, %s142
      %p151 = scmp.eq.s32.totalorder %s26, 0
      %p152 = por %p150, %p151
      %p153 = scmp.ne.s32.totalorder %s141, %s142
      %p154 = scmp.eq.s32.totalorder %s27, 3
      %p155 = por %p153, %p154
      %p157 = scmp.ne.s32.totalorder %s142, %s156
      %p158 = scmp.eq.s32.totalorder %s27, 0
      %p159 = por %p157, %p158
      %s161 = sadd.s32 %s160, 1
      %p164 = scmp.eq.s32.totalorder %s21, 3
      %p165 = scmp.ne.s32.totalorder %s160, %s162
      %p166 = scmp.eq.s32.totalorder %s21, 0
      %p167 = por %p165, %p166
      %p168 = scmp.ne.s32.totalorder %s160, %s162
      %p169 = scmp.eq.s32.totalorder %s26, 3
      %p170 = por %p168, %p169
      %p171 = scmp.ne.s32.totalorder %s162, %s163
      %p172 = scmp.eq.s32.totalorder %s26, 0
      %p173 = por %p171, %p172
      %p174 = scmp.ne.s32.totalorder %s162, %s163
      %p175 = scmp.eq.s32.totalorder %s27, 3
      %p176 = por %p174, %p175
      %p178 = scmp.ne.s32.totalorder %s163, %s177
      %p179 = scmp.eq.s32.totalorder %s27, 0
      %p180 = por %p178, %p179
      %s181 = ssub.s32 %s21, %s28
      %p182 = scmp.eq.s32.totalorder %s181, 0
      %s184 = sadd.s32 %s183, 1
      %s185 = scalar_select %p182, %s183, %s184
      %p188 = pneg %p182
      %p189 = scmp.eq.s32.totalorder %s21, 3
      %p190 = por %p188, %p189
      %p191 = scmp.ne.s32.totalorder %s183, %s186
      %p192 = scmp.eq.s32.totalorder %s21, 0
      %p193 = por %p191, %p192
      %p194 = scmp.ne.s32.totalorder %s183, %s186
      %p195 = scmp.eq.s32.totalorder %s26, 3
      %p196 = por %p194, %p195
      %p197 = scmp.ne.s32.totalorder %s186, %s187
      %p198 = scmp.eq.s32.totalorder %s26, 0
      %p199 = por %p197, %p198
      %p200 = scmp.ne.s32.totalorder %s186, %s187
      %p201 = scmp.eq.s32.totalorder %s27, 3
      %p202 = por %p200, %p201
      %p204 = scmp.ne.s32.totalorder %s187, %s203
      %p205 = scmp.eq.s32.totalorder %s27, 0
      %p206 = por %p204, %p205
      %p207 = scmp.le.s32.totalorder 1, %s21
      %p208 = scmp.lt.s32.totalorder %s21, 5
      %p209 = pnand %p207, %p208
      %p210 = pneg %p209
      // Predicated region
      $region9: #{tpu_custom_call.1} parent=5 // pred_check
        _
      $region10: #{tpu_custom_call.1} parent=5 // pred_check_branch
        %212 = sbr.rel (%p209) target = $region12
      $region11: #{tpu_custom_call.1} parent=5 // pred_region
        %s213 = ssub.s32 %s21, 1
        // Predicated region
        $region13: #{tpu_custom_call.1} parent=11 // pred_check
          %p214 = pneg %p68
        $region14: #{tpu_custom_call.1} parent=11 // pred_check_branch
          %216 = sbr.rel (%p214) target = $region16
        $region15: #{tpu_custom_call.1} parent=11 // pred_region
          %218 = vsyncadd [#allocation6], 0
          %s219 = sshll.u32 %s1, 4
          %s220 = int_to_ptr.hbm [resolvable:$true] %s219
          %s221 = sshll.u32 [#allocation5], 4
          %s222 = int_to_ptr.vmem [resolvable:$true] %s221
          %227 = dma.hbm_to_vmem [thread:$0]  %s220, 1024, %s222, [#allocation6], 64, 64, 4
        $region16: #{tpu_custom_call.1} parent=11 // pred_fallthru
          _
        // Predicated region
        $region17: #{tpu_custom_call.1} parent=11 // pred_check
          %p228 = pneg %p89
        $region18: #{tpu_custom_call.1} parent=11 // pred_check_branch
          %230 = sbr.rel (%p228) target = $region20
        $region19: #{tpu_custom_call.1} parent=11 // pred_region
          %232 = vsyncadd [#allocation6], 0
          %s233 = sshll.u32 %s2, 4
          %s234 = int_to_ptr.hbm [resolvable:$true] %s233
          %s235 = sshll.u32 [#allocation7], 4
          %s236 = int_to_ptr.vmem [resolvable:$true] %s235
          %241 = dma.hbm_to_vmem [thread:$0]  %s234, 1024, %s236, [#allocation6], 64, 64, 4
        $region20: #{tpu_custom_call.1} parent=11 // pred_fallthru
          _
        // Predicated region
        $region21: #{tpu_custom_call.1} parent=11 // pred_check
          %p242 = pneg %p110
        $region22: #{tpu_custom_call.1} parent=11 // pred_check_branch
          %244 = sbr.rel (%p242) target = $region24
        $region23: #{tpu_custom_call.1} parent=11 // pred_region
          _
        $region24: #{tpu_custom_call.1} parent=11 // pred_fallthru
          _
        // Predicated region
        $region25: #{tpu_custom_call.1} parent=11 // pred_check
          %p245 = pneg %p131
        $region26: #{tpu_custom_call.1} parent=11 // pred_check_branch
          %247 = sbr.rel (%p245) target = $region28
        $region27: #{tpu_custom_call.1} parent=11 // pred_region
          _
        $region28: #{tpu_custom_call.1} parent=11 // pred_fallthru
          _
        // Predicated region
        $region29: #{tpu_custom_call.1} parent=11 // pred_check
          %p248 = pneg %p152
        $region30: #{tpu_custom_call.1} parent=11 // pred_check_branch
          %250 = sbr.rel (%p248) target = $region32
        $region31: #{tpu_custom_call.1} parent=11 // pred_region
          %252 = vsyncadd [#allocation9], 0
          %s253 = sshll.u32 %s5, 4
          %s254 = int_to_ptr.hbm [resolvable:$true] %s253
          %s255 = sshll.u32 [#allocation8], 4
          %s256 = int_to_ptr.vmem [resolvable:$true] %s255
          %261 = dma.hbm_to_vmem [thread:$0]  %s254, 1024, %s256, [#allocation9], 64, 64, 4
        $region32: #{tpu_custom_call.1} parent=11 // pred_fallthru
          _
        // Predicated region
        $region33: #{tpu_custom_call.1} parent=11 // pred_check
          %p262 = pneg %p173
        $region34: #{tpu_custom_call.1} parent=11 // pred_check_branch
          %264 = sbr.rel (%p262) target = $region36
        $region35: #{tpu_custom_call.1} parent=11 // pred_region
          _
        $region36: #{tpu_custom_call.1} parent=11 // pred_fallthru
          _
      $region12: #{tpu_custom_call.1} parent=5 // pred_fallthru
        _
      %p265 = scmp.lt.s32.totalorder %s21, 4
      // Predicated region
      $region37: #{tpu_custom_call.1} parent=5 // pred_check
        %p266 = pneg %p265
      $region38: #{tpu_custom_call.1} parent=5 // pred_check_branch
        %268 = sbr.rel (%p266) target = $region40
      $region39: #{tpu_custom_call.1} parent=5 // pred_region
        // Predicated region
        $region41: #{tpu_custom_call.1} parent=39 // pred_check
          %p269 = pneg %p41
        $region42: #{tpu_custom_call.1} parent=39 // pred_check_branch
          %271 = sbr.rel (%p269) target = $region44
        $region43: #{tpu_custom_call.1} parent=39 // pred_region
          %s272 = sand.u32 %s31, 1
          %s273 = scalar_lea.sflag [#allocation3], %s272
          %s274 = sand.u32 %s31, 1
          %s275 = smul.addr %s274, 128
          %s276 = scalar_lea.vmem [#allocation2], %s275
          %s277 = smul.u32 16, %s21
          %279 = vsyncadd %s273, 0
          %s280 = smul.addr %s277, 8
          %s281 = scalar_lea.hbm %s0, %s280
          %s282 = sshll.u32 %s281, 4
          %s283 = int_to_ptr.hbm [resolvable:$true] %s282
          %s284 = sshll.u32 %s276, 4
          %s285 = int_to_ptr.vmem [resolvable:$true] %s284
          %290 = dma.hbm_to_vmem [thread:$0]  %s283, 2048, %s285, %s273, 128, 128, 8
        $region44: #{tpu_custom_call.1} parent=39 // pred_fallthru
          _
      $region40: #{tpu_custom_call.1} parent=5 // pred_fallthru
        _
      %p291 = scmp.le.s32.totalorder 1, %s21
      %p292 = scmp.lt.s32.totalorder %s21, 5
      %p293 = pnand %p291, %p292
      %p294 = pneg %p293
      // Predicated region
      $region45: #{tpu_custom_call.1} parent=5 // pred_check
        _
      $region46: #{tpu_custom_call.1} parent=5 // pred_check_branch
        %296 = sbr.rel (%p293) target = $region48
      $region47: #{tpu_custom_call.1} parent=5 // pred_region
        %s297 = ssub.s32 %s21, 1
        %s298 = sand.u32 %s34, 1
        %s299 = scalar_lea.sflag [#allocation3], %s298
        %s300 = sand.u32 %s34, 1
        %s301 = smul.addr %s300, 128
        %s302 = scalar_lea.vmem [#allocation2], %s301
        // Predicated region
        $region49: #{tpu_custom_call.1} parent=47 // pred_check
          %p303 = pneg %p47
        $region50: #{tpu_custom_call.1} parent=47 // pred_check_branch
          %305 = sbr.rel (%p303) target = $region52
        $region51: #{tpu_custom_call.1} parent=47 // pred_region
          %307 = dma.done %s299, 2048
        $region52: #{tpu_custom_call.1} parent=47 // pred_fallthru
          _
        // Predicated region
        $region53: #{tpu_custom_call.1} parent=47 // pred_check
          %p308 = pneg %p68
        $region54: #{tpu_custom_call.1} parent=47 // pred_check_branch
          %310 = sbr.rel (%p308) target = $region56
        $region55: #{tpu_custom_call.1} parent=47 // pred_region
          %312 = dma.done [#allocation6], 1024
        $region56: #{tpu_custom_call.1} parent=47 // pred_fallthru
          _
        // Predicated region
        $region57: #{tpu_custom_call.1} parent=47 // pred_check
          %p313 = pneg %p89
        $region58: #{tpu_custom_call.1} parent=47 // pred_check_branch
          %315 = sbr.rel (%p313) target = $region60
        $region59: #{tpu_custom_call.1} parent=47 // pred_region
          %317 = dma.done [#allocation6], 1024
        $region60: #{tpu_custom_call.1} parent=47 // pred_fallthru
          _
        // Predicated region
        $region61: #{tpu_custom_call.1} parent=47 // pred_check
          %p318 = pneg %p152
        $region62: #{tpu_custom_call.1} parent=47 // pred_check_branch
          %320 = sbr.rel (%p318) target = $region64
        $region63: #{tpu_custom_call.1} parent=47 // pred_region
          %322 = dma.done [#allocation9], 1024
        $region64: #{tpu_custom_call.1} parent=47 // pred_fallthru
          _
        %s323 = sand.u32 %s34, 1
        %s324 = scalar_lea.sflag [#allocation3], %s323
        %s325 = sand.u32 %s34, 1
        %s326 = smul.addr %s325, 128
        %s327 = scalar_lea.vmem [#allocation2], %s326
        %p328 = pneg %p47
        %p329 = pneg %p44
        %p330 = pneg %p68
        %p331 = pneg %p65
        %p332 = pneg %p89
        %p333 = pneg %p86
        %p334 = pneg %p110
        %p335 = pneg %p107
        %p336 = pneg %p131
        %p337 = pneg %p128
        %p338 = pneg %p152
        %p339 = pneg %p149
        %p340 = pneg %p173
        %p341 = pneg %p170
        %p342 = pneg %p199
        %p343 = pneg %p196
        %s344 = sand.u32 %s186, 1
        %s345 = scalar_lea.sflag [#allocation4], %s344
        %s346 = sand.u32 %s186, 1
        %s347 = smul.addr %s346, 128
        %s348 = scalar_lea.vmem [#allocation10], %s347
        %s349 = smul.u32 16, %s26
        %s350 = smul.u32 16, %s26
        %v351 = vld [vmem:[%s302] sm:$0xff]
        %v352 = vld [vmem:[%s302 + $0x8] sm:$0xff]
        %v353 = vld [vmem:[%s302 + $0x10] sm:$0xff]
        %v354 = vld [vmem:[%s302 + $0x18] sm:$0xff]
        %v355 = vld [vmem:[%s302 + $0x20] sm:$0xff]
        %v356 = vld [vmem:[%s302 + $0x28] sm:$0xff]
        %v357 = vld [vmem:[%s302 + $0x30] sm:$0xff]
        %v358 = vld [vmem:[%s302 + $0x38] sm:$0xff]
        %v359 = vld [vmem:[%s302 + $0x40] sm:$0xff]
        %v360 = vld [vmem:[%s302 + $0x48] sm:$0xff]
        %v361 = vld [vmem:[%s302 + $0x50] sm:$0xff]
        %v362 = vld [vmem:[%s302 + $0x58] sm:$0xff]
        %v363 = vld [vmem:[%s302 + $0x60] sm:$0xff]
        %v364 = vld [vmem:[%s302 + $0x68] sm:$0xff]
        %v365 = vld [vmem:[%s302 + $0x70] sm:$0xff]
        %v366 = vld [vmem:[%s302 + $0x78] sm:$0xff]
        %v367 = vpack.c.bf16 %v352, %v351
        %v368 = vpack.c.bf16 %v354, %v353
        %v369 = vpack.c.bf16 %v356, %v355
        %v370 = vpack.c.bf16 %v358, %v357
        %v371 = vpack.c.bf16 %v360, %v359
        %v372 = vpack.c.bf16 %v362, %v361
        %v373 = vpack.c.bf16 %v364, %v363
        %v374 = vpack.c.bf16 %v366, %v365
        %v375 = vld [vmem:[#allocation5] sm:$0xf]
        %v376 = vld [vmem:[#allocation5 + $0x4] sm:$0xf]
        %v377 = vld [vmem:[#allocation5 + $0x8] sm:$0xf]
        %v378 = vld [vmem:[#allocation5 + $0xc] sm:$0xf]
        %v379 = vld [vmem:[#allocation5 + $0x10] sm:$0xf]
        %v380 = vld [vmem:[#allocation5 + $0x14] sm:$0xf]
        %v381 = vld [vmem:[#allocation5 + $0x18] sm:$0xf]
        %v382 = vld [vmem:[#allocation5 + $0x1c] sm:$0xf]
        %v383 = vld [vmem:[#allocation5 + $0x20] sm:$0xf]
        %v384 = vld [vmem:[#allocation5 + $0x24] sm:$0xf]
        %v385 = vld [vmem:[#allocation5 + $0x28] sm:$0xf]
        %v386 = vld [vmem:[#allocation5 + $0x2c] sm:$0xf]
        %v387 = vld [vmem:[#allocation5 + $0x30] sm:$0xf]
        %v388 = vld [vmem:[#allocation5 + $0x34] sm:$0xf]
        %v389 = vld [vmem:[#allocation5 + $0x38] sm:$0xf]
        %v390 = vld [vmem:[#allocation5 + $0x3c] sm:$0xf]
        %v391 = vld [vmem:[%s3] sm:$0x1]
        %v393 = vperm.slane %v391, 0
        %v411 = vunpack.c.l.b16 %v375
        %v412 = vunpack.c.l.b16 %v376
        %v413 = vunpack.c.l.b16 %v377
        %v414 = vunpack.c.l.b16 %v378
        %v415 = vunpack.c.l.b16 %v379
        %v416 = vunpack.c.l.b16 %v380
        %v417 = vunpack.c.l.b16 %v381
        %v418 = vunpack.c.l.b16 %v382
        %v419 = vunpack.c.l.b16 %v383
        %v420 = vunpack.c.l.b16 %v384
        %v421 = vunpack.c.l.b16 %v385
        %v422 = vunpack.c.l.b16 %v386
        %v423 = vunpack.c.l.b16 %v387
        %v424 = vunpack.c.l.b16 %v388
        %v425 = vunpack.c.l.b16 %v389
        %v426 = vunpack.c.l.b16 %v390
        %v427 = vpack.c.b16 %v412, %v411
        %v428 = vpack.c.b16 %v414, %v413
        %v429 = vpack.c.b16 %v416, %v415
        %v430 = vpack.c.b16 %v418, %v417
        %v431 = vpack.c.b16 %v420, %v419
        %v432 = vpack.c.b16 %v422, %v421
        %v433 = vpack.c.b16 %v424, %v423
        %v434 = vpack.c.b16 %v426, %v425
        %443 = vmatpush.bf16.msra.mxu0 %v434
        %444 = vmatpush.bf16.msra.mxu0 %v433
        %445 = vmatpush.bf16.msra.mxu0 %v432
        %446 = vmatpush.bf16.msra.mxu0 %v431
        %447 = vmatpush.bf16.msra.mxu0 %v430
        %448 = vmatpush.bf16.msra.mxu0 %v429
        %449 = vmatpush.bf16.msra.mxu0 %v428
        %450 = vmatpush.bf16.msra.mxu0 %v427
        %451 = vmatmul.bf16.gmra.mxu0 %v367
        %v452 = vpop.f32.mrf.mxu0
        %v453 = vadd.f32 %v393, %v452
        %v454 = vpop.f32.mrf.mxu0
        %v455 = vadd.f32 %v393, %v454
        %456 = vmatmul.bf16.gmra.mxu0 %v368
        %v457 = vpop.f32.mrf.mxu0
        %v458 = vadd.f32 %v393, %v457
        %v459 = vpop.f32.mrf.mxu0
        %v460 = vadd.f32 %v393, %v459
        %461 = vmatmul.bf16.gmra.mxu0 %v369
        %v462 = vpop.f32.mrf.mxu0
        %v463 = vadd.f32 %v393, %v462
        %v464 = vpop.f32.mrf.mxu0
        %v465 = vadd.f32 %v393, %v464
        %466 = vmatmul.bf16.gmra.mxu0 %v370
        %v467 = vpop.f32.mrf.mxu0
        %v468 = vadd.f32 %v393, %v467
        %v469 = vpop.f32.mrf.mxu0
        %v470 = vadd.f32 %v393, %v469
        %471 = vmatmul.bf16.gmra.mxu0 %v371
        %v472 = vpop.f32.mrf.mxu0
        %v473 = vadd.f32 %v393, %v472
        %v474 = vpop.f32.mrf.mxu0
        %v475 = vadd.f32 %v393, %v474
        %476 = vmatmul.bf16.gmra.mxu0 %v372
        %v477 = vpop.f32.mrf.mxu0
        %v478 = vadd.f32 %v393, %v477
        %v479 = vpop.f32.mrf.mxu0
        %v480 = vadd.f32 %v393, %v479
        %481 = vmatmul.bf16.gmra.mxu0 %v373
        %v482 = vpop.f32.mrf.mxu0
        %v483 = vadd.f32 %v393, %v482
        %v484 = vpop.f32.mrf.mxu0
        %v485 = vadd.f32 %v393, %v484
        %486 = vmatmul.bf16.gmra.mxu0 %v374
        %v487 = vpop.f32.mrf.mxu0
        %v488 = vadd.f32 %v393, %v487
        %v489 = vpop.f32.mrf.mxu0
        %v490 = vadd.f32 %v393, %v489
        %491 = vdwg.mxu0
        %v492 = vld [vmem:[#allocation7] sm:$0xf]
        %v493 = vld [vmem:[#allocation7 + $0x4] sm:$0xf]
        %v494 = vld [vmem:[#allocation7 + $0x8] sm:$0xf]
        %v495 = vld [vmem:[#allocation7 + $0xc] sm:$0xf]
        %v496 = vld [vmem:[#allocation7 + $0x10] sm:$0xf]
        %v497 = vld [vmem:[#allocation7 + $0x14] sm:$0xf]
        %v498 = vld [vmem:[#allocation7 + $0x18] sm:$0xf]
        %v499 = vld [vmem:[#allocation7 + $0x1c] sm:$0xf]
        %v500 = vld [vmem:[#allocation7 + $0x20] sm:$0xf]
        %v501 = vld [vmem:[#allocation7 + $0x24] sm:$0xf]
        %v502 = vld [vmem:[#allocation7 + $0x28] sm:$0xf]
        %v503 = vld [vmem:[#allocation7 + $0x2c] sm:$0xf]
        %v504 = vld [vmem:[#allocation7 + $0x30] sm:$0xf]
        %v505 = vld [vmem:[#allocation7 + $0x34] sm:$0xf]
        %v506 = vld [vmem:[#allocation7 + $0x38] sm:$0xf]
        %v507 = vld [vmem:[#allocation7 + $0x3c] sm:$0xf]
        %v508 = vld [vmem:[%s4] sm:$0x1]
        %v510 = vperm.slane %v508, 0
        %v528 = vunpack.c.l.b16 %v492
        %v529 = vunpack.c.l.b16 %v493
        %v530 = vunpack.c.l.b16 %v494
        %v531 = vunpack.c.l.b16 %v495
        %v532 = vunpack.c.l.b16 %v496
        %v533 = vunpack.c.l.b16 %v497
        %v534 = vunpack.c.l.b16 %v498
        %v535 = vunpack.c.l.b16 %v499
        %v536 = vunpack.c.l.b16 %v500
        %v537 = vunpack.c.l.b16 %v501
        %v538 = vunpack.c.l.b16 %v502
        %v539 = vunpack.c.l.b16 %v503
        %v540 = vunpack.c.l.b16 %v504
        %v541 = vunpack.c.l.b16 %v505
        %v542 = vunpack.c.l.b16 %v506
        %v543 = vunpack.c.l.b16 %v507
        %v544 = vpack.c.b16 %v529, %v528
        %v545 = vpack.c.b16 %v531, %v530
        %v546 = vpack.c.b16 %v533, %v532
        %v547 = vpack.c.b16 %v535, %v534
        %v548 = vpack.c.b16 %v537, %v536
        %v549 = vpack.c.b16 %v539, %v538
        %v550 = vpack.c.b16 %v541, %v540
        %v551 = vpack.c.b16 %v543, %v542
        %560 = vmatpush.bf16.msra.mxu0 %v551
        %561 = vmatpush.bf16.msra.mxu0 %v550
        %562 = vmatpush.bf16.msra.mxu0 %v549
        %563 = vmatpush.bf16.msra.mxu0 %v548
        %564 = vmatpush.bf16.msra.mxu0 %v547
        %565 = vmatpush.bf16.msra.mxu0 %v546
        %566 = vmatpush.bf16.msra.mxu0 %v545
        %567 = vmatpush.bf16.msra.mxu0 %v544
        %568 = vmatmul.bf16.gmra.mxu0 %v367
        %v569 = vpop.f32.mrf.mxu0
        %v570 = vadd.f32 %v510, %v569
        %v571 = vpop.f32.mrf.mxu0
        %v572 = vadd.f32 %v510, %v571
        %573 = vmatmul.bf16.gmra.mxu0 %v368
        %v574 = vpop.f32.mrf.mxu0
        %v575 = vadd.f32 %v510, %v574
        %v576 = vpop.f32.mrf.mxu0
        %v577 = vadd.f32 %v510, %v576
        %578 = vmatmul.bf16.gmra.mxu0 %v369
        %v579 = vpop.f32.mrf.mxu0
        %v580 = vadd.f32 %v510, %v579
        %v581 = vpop.f32.mrf.mxu0
        %v582 = vadd.f32 %v510, %v581
        %583 = vmatmul.bf16.gmra.mxu0 %v370
        %v584 = vpop.f32.mrf.mxu0
        %v585 = vadd.f32 %v510, %v584
        %v586 = vpop.f32.mrf.mxu0
        %v587 = vadd.f32 %v510, %v586
        %588 = vmatmul.bf16.gmra.mxu0 %v371
        %v589 = vpop.f32.mrf.mxu0
        %v590 = vadd.f32 %v510, %v589
        %v591 = vpop.f32.mrf.mxu0
        %v592 = vadd.f32 %v510, %v591
        %593 = vmatmul.bf16.gmra.mxu0 %v372
        %v594 = vpop.f32.mrf.mxu0
        %v595 = vadd.f32 %v510, %v594
        %v596 = vpop.f32.mrf.mxu0
        %v597 = vadd.f32 %v510, %v596
        %598 = vmatmul.bf16.gmra.mxu0 %v373
        %v599 = vpop.f32.mrf.mxu0
        %v600 = vadd.f32 %v510, %v599
        %v601 = vpop.f32.mrf.mxu0
        %v602 = vadd.f32 %v510, %v601
        %603 = vmatmul.bf16.gmra.mxu0 %v374
        %v604 = vpop.f32.mrf.mxu0
        %v605 = vadd.f32 %v510, %v604
        %v606 = vpop.f32.mrf.mxu0
        %v607 = vadd.f32 %v510, %v606
        %608 = vdwg.mxu0
        %v609 = vmul.f32 %v570, 0.5
        %v610 = vmul.f32 %v572, 0.5
        %v611 = vmul.f32 %v575, 0.5
        %v612 = vmul.f32 %v577, 0.5
        %v613 = vmul.f32 %v580, 0.5
        %v614 = vmul.f32 %v582, 0.5
        %v615 = vmul.f32 %v585, 0.5
        %v616 = vmul.f32 %v587, 0.5
        %v617 = vmul.f32 %v590, 0.5
        %v618 = vmul.f32 %v592, 0.5
        %v619 = vmul.f32 %v595, 0.5
        %v620 = vmul.f32 %v597, 0.5
        %v621 = vmul.f32 %v600, 0.5
        %v622 = vmul.f32 %v602, 0.5
        %v623 = vmul.f32 %v605, 0.5
        %v624 = vmul.f32 %v607, 0.5
        %v625 = vmul.f32 %v570, 0.70710677
        %v626 = vmul.f32 %v572, 0.70710677
        %v627 = vmul.f32 %v575, 0.70710677
        %v628 = vmul.f32 %v577, 0.70710677
        %v629 = vmul.f32 %v580, 0.70710677
        %v630 = vmul.f32 %v582, 0.70710677
        %v631 = vmul.f32 %v585, 0.70710677
        %v632 = vmul.f32 %v587, 0.70710677
        %v633 = vmul.f32 %v590, 0.70710677
        %v634 = vmul.f32 %v592, 0.70710677
        %v635 = vmul.f32 %v595, 0.70710677
        %v636 = vmul.f32 %v597, 0.70710677
        %v637 = vmul.f32 %v600, 0.70710677
        %v638 = vmul.f32 %v602, 0.70710677
        %v639 = vmul.f32 %v605, 0.70710677
        %v640 = vmul.f32 %v607, 0.70710677
        %v641 = vmul.f32 %v625, %v625
        %v642 = vmin.f32 16.0, %v641
        %v643 = vmul.f32 %v642, 2.1237322e-06
        %v644 = vadd.f32 %v643, 0.00028619796
        %v645 = vmul.f32 %v642, %v644
        %v646 = vadd.f32 %v645, 0.0036580483
        %v647 = vmul.f32 %v642, %v646
        %v648 = vadd.f32 %v647, 0.05243302
        %v649 = vmul.f32 %v642, %v648
        %v650 = vadd.f32 %v649, 0.18741608
        %v651 = vmul.f32 %v642, %v650
        %v652 = vadd.f32 %v651, 1.1283791
        %v653 = vmul.f32 %v625, %v652
        %v654 = vmul.f32 %v642, 3.8918573e-05
        %v655 = vadd.f32 %v654, 0.001143296
        %v656 = vmul.f32 %v642, %v655
        %v657 = vadd.f32 %v656, 0.014752088
        %v658 = vmul.f32 %v642, %v657
        %v659 = vadd.f32 %v658, 0.112945676
        %v660 = vmul.f32 %v642, %v659
        %v661 = vadd.f32 %v660, 0.4994258
        %v662 = vmul.f32 %v642, %v661
        %v663 = vadd.f32 %v662, 1.0
        %v664 = vrcp.pop %v663
        %v665 = vmul.f32 %v663, %v664
        %v666 = vsub.f32 1.0, %v665
        %v667 = vmul.f32 %v664, %v666
        %v668 = vadd.f32 %v664, %v667
        %vm669 = vweird.f32 %v663
        %vm670 = vweird.f32 %v664
        %vm671 = vmor %vm669, %vm670
        %v672 = vsel %vm671, %v664, %v668
        %v673 = vand.u32 2147483647, %v663
        %vm674 = vcmp.eq.f32.partialorder %v673, 8.507059e+37
        %v675 = vand.u32 %v663, 2147483648
        %v676 = vor.u32 1.1754944e-38, %v675
        %v677 = vsel %vm674, %v676, %v672
        %v678 = vmul.f32 %v653, %v677
        %v679 = vmin.f32 %v678, 1.0
        %v680 = vmax.f32 %v679, -1.0
        %v681 = vmul.f32 %v626, %v626
        %v682 = vmin.f32 16.0, %v681
        %v683 = vmul.f32 %v682, 2.1237322e-06
        %v684 = vadd.f32 %v683, 0.00028619796
        %v685 = vmul.f32 %v682, %v684
        %v686 = vadd.f32 %v685, 0.0036580483
        %v687 = vmul.f32 %v682, %v686
        %v688 = vadd.f32 %v687, 0.05243302
        %v689 = vmul.f32 %v682, %v688
        %v690 = vadd.f32 %v689, 0.18741608
        %v691 = vmul.f32 %v682, %v690
        %v692 = vadd.f32 %v691, 1.1283791
        %v693 = vmul.f32 %v626, %v692
        %v694 = vmul.f32 %v682, 3.8918573e-05
        %v695 = vadd.f32 %v694, 0.001143296
        %v696 = vmul.f32 %v682, %v695
        %v697 = vadd.f32 %v696, 0.014752088
        %v698 = vmul.f32 %v682, %v697
        %v699 = vadd.f32 %v698, 0.112945676
        %v700 = vmul.f32 %v682, %v699
        %v701 = vadd.f32 %v700, 0.4994258
        %v702 = vmul.f32 %v682, %v701
        %v703 = vadd.f32 %v702, 1.0
        %v704 = vrcp.pop %v703
        %v705 = vmul.f32 %v703, %v704
        %v706 = vsub.f32 1.0, %v705
        %v707 = vmul.f32 %v704, %v706
        %v708 = vadd.f32 %v704, %v707
        %vm709 = vweird.f32 %v703
        %vm710 = vweird.f32 %v704
        %vm711 = vmor %vm709, %vm710
        %v712 = vsel %vm711, %v704, %v708
        %v713 = vand.u32 2147483647, %v703
        %vm714 = vcmp.eq.f32.partialorder %v713, 8.507059e+37
        %v715 = vand.u32 %v703, 2147483648
        %v716 = vor.u32 1.1754944e-38, %v715
        %v717 = vsel %vm714, %v716, %v712
        %v718 = vmul.f32 %v693, %v717
        %v719 = vmin.f32 %v718, 1.0
        %v720 = vmax.f32 %v719, -1.0
        %v721 = vmul.f32 %v627, %v627
        %v722 = vmin.f32 16.0, %v721
        %v723 = vmul.f32 %v722, 2.1237322e-06
        %v724 = vadd.f32 %v723, 0.00028619796
        %v725 = vmul.f32 %v722, %v724
        %v726 = vadd.f32 %v725, 0.0036580483
        %v727 = vmul.f32 %v722, %v726
        %v728 = vadd.f32 %v727, 0.05243302
        %v729 = vmul.f32 %v722, %v728
        %v730 = vadd.f32 %v729, 0.18741608
        %v731 = vmul.f32 %v722, %v730
        %v732 = vadd.f32 %v731, 1.1283791
        %v733 = vmul.f32 %v627, %v732
        %v734 = vmul.f32 %v722, 3.8918573e-05
        %v735 = vadd.f32 %v734, 0.001143296
        %v736 = vmul.f32 %v722, %v735
        %v737 = vadd.f32 %v736, 0.014752088
        %v738 = vmul.f32 %v722, %v737
        %v739 = vadd.f32 %v738, 0.112945676
        %v740 = vmul.f32 %v722, %v739
        %v741 = vadd.f32 %v740, 0.4994258
        %v742 = vmul.f32 %v722, %v741
        %v743 = vadd.f32 %v742, 1.0
        %v744 = vrcp.pop %v743
        %v745 = vmul.f32 %v743, %v744
        %v746 = vsub.f32 1.0, %v745
        %v747 = vmul.f32 %v744, %v746
        %v748 = vadd.f32 %v744, %v747
        %vm749 = vweird.f32 %v743
        %vm750 = vweird.f32 %v744
        %vm751 = vmor %vm749, %vm750
        %v752 = vsel %vm751, %v744, %v748
        %v753 = vand.u32 2147483647, %v743
        %vm754 = vcmp.eq.f32.partialorder %v753, 8.507059e+37
        %v755 = vand.u32 %v743, 2147483648
        %v756 = vor.u32 1.1754944e-38, %v755
        %v757 = vsel %vm754, %v756, %v752
        %v758 = vmul.f32 %v733, %v757
        %v759 = vmin.f32 %v758, 1.0
        %v760 = vmax.f32 %v759, -1.0
        %v761 = vmul.f32 %v628, %v628
        %v762 = vmin.f32 16.0, %v761
        %v763 = vmul.f32 %v762, 2.1237322e-06
        %v764 = vadd.f32 %v763, 0.00028619796
        %v765 = vmul.f32 %v762, %v764
        %v766 = vadd.f32 %v765, 0.0036580483
        %v767 = vmul.f32 %v762, %v766
        %v768 = vadd.f32 %v767, 0.05243302
        %v769 = vmul.f32 %v762, %v768
        %v770 = vadd.f32 %v769, 0.18741608
        %v771 = vmul.f32 %v762, %v770
        %v772 = vadd.f32 %v771, 1.1283791
        %v773 = vmul.f32 %v628, %v772
        %v774 = vmul.f32 %v762, 3.8918573e-05
        %v775 = vadd.f32 %v774, 0.001143296
        %v776 = vmul.f32 %v762, %v775
        %v777 = vadd.f32 %v776, 0.014752088
        %v778 = vmul.f32 %v762, %v777
        %v779 = vadd.f32 %v778, 0.112945676
        %v780 = vmul.f32 %v762, %v779
        %v781 = vadd.f32 %v780, 0.4994258
        %v782 = vmul.f32 %v762, %v781
        %v783 = vadd.f32 %v782, 1.0
        %v784 = vrcp.pop %v783
        %v785 = vmul.f32 %v783, %v784
        %v786 = vsub.f32 1.0, %v785
        %v787 = vmul.f32 %v784, %v786
        %v788 = vadd.f32 %v784, %v787
        %vm789 = vweird.f32 %v783
        %vm790 = vweird.f32 %v784
        %vm791 = vmor %vm789, %vm790
        %v792 = vsel %vm791, %v784, %v788
        %v793 = vand.u32 2147483647, %v783
        %vm794 = vcmp.eq.f32.partialorder %v793, 8.507059e+37
        %v795 = vand.u32 %v783, 2147483648
        %v796 = vor.u32 1.1754944e-38, %v795
        %v797 = vsel %vm794, %v796, %v792
        %v798 = vmul.f32 %v773, %v797
        %v799 = vmin.f32 %v798, 1.0
        %v800 = vmax.f32 %v799, -1.0
        %v801 = vmul.f32 %v629, %v629
        %v802 = vmin.f32 16.0, %v801
        %v803 = vmul.f32 %v802, 2.1237322e-06
        %v804 = vadd.f32 %v803, 0.00028619796
        %v805 = vmul.f32 %v802, %v804
        %v806 = vadd.f32 %v805, 0.0036580483
        %v807 = vmul.f32 %v802, %v806
        %v808 = vadd.f32 %v807, 0.05243302
        %v809 = vmul.f32 %v802, %v808
        %v810 = vadd.f32 %v809, 0.18741608
        %v811 = vmul.f32 %v802, %v810
        %v812 = vadd.f32 %v811, 1.1283791
        %v813 = vmul.f32 %v629, %v812
        %v814 = vmul.f32 %v802, 3.8918573e-05
        %v815 = vadd.f32 %v814, 0.001143296
        %v816 = vmul.f32 %v802, %v815
        %v817 = vadd.f32 %v816, 0.014752088
        %v818 = vmul.f32 %v802, %v817
        %v819 = vadd.f32 %v818, 0.112945676
        %v820 = vmul.f32 %v802, %v819
        %v821 = vadd.f32 %v820, 0.4994258
        %v822 = vmul.f32 %v802, %v821
        %v823 = vadd.f32 %v822, 1.0
        %v824 = vrcp.pop %v823
        %v825 = vmul.f32 %v823, %v824
        %v826 = vsub.f32 1.0, %v825
        %v827 = vmul.f32 %v824, %v826
        %v828 = vadd.f32 %v824, %v827
        %vm829 = vweird.f32 %v823
        %vm830 = vweird.f32 %v824
        %vm831 = vmor %vm829, %vm830
        %v832 = vsel %vm831, %v824, %v828
        %v833 = vand.u32 2147483647, %v823
        %vm834 = vcmp.eq.f32.partialorder %v833, 8.507059e+37
        %v835 = vand.u32 %v823, 2147483648
        %v836 = vor.u32 1.1754944e-38, %v835
        %v837 = vsel %vm834, %v836, %v832
        %v838 = vmul.f32 %v813, %v837
        %v839 = vmin.f32 %v838, 1.0
        %v840 = vmax.f32 %v839, -1.0
        %v841 = vmul.f32 %v630, %v630
        %v842 = vmin.f32 16.0, %v841
        %v843 = vmul.f32 %v842, 2.1237322e-06
        %v844 = vadd.f32 %v843, 0.00028619796
        %v845 = vmul.f32 %v842, %v844
        %v846 = vadd.f32 %v845, 0.0036580483
        %v847 = vmul.f32 %v842, %v846
        %v848 = vadd.f32 %v847, 0.05243302
        %v849 = vmul.f32 %v842, %v848
        %v850 = vadd.f32 %v849, 0.18741608
        %v851 = vmul.f32 %v842, %v850
        %v852 = vadd.f32 %v851, 1.1283791
        %v853 = vmul.f32 %v630, %v852
        %v854 = vmul.f32 %v842, 3.8918573e-05
        %v855 = vadd.f32 %v854, 0.001143296
        %v856 = vmul.f32 %v842, %v855
        %v857 = vadd.f32 %v856, 0.014752088
        %v858 = vmul.f32 %v842, %v857
        %v859 = vadd.f32 %v858, 0.112945676
        %v860 = vmul.f32 %v842, %v859
        %v861 = vadd.f32 %v860, 0.4994258
        %v862 = vmul.f32 %v842, %v861
        %v863 = vadd.f32 %v862, 1.0
        %v864 = vrcp.pop %v863
        %v865 = vmul.f32 %v863, %v864
        %v866 = vsub.f32 1.0, %v865
        %v867 = vmul.f32 %v864, %v866
        %v868 = vadd.f32 %v864, %v867
        %vm869 = vweird.f32 %v863
        %vm870 = vweird.f32 %v864
        %vm871 = vmor %vm869, %vm870
        %v872 = vsel %vm871, %v864, %v868
        %v873 = vand.u32 2147483647, %v863
        %vm874 = vcmp.eq.f32.partialorder %v873, 8.507059e+37
        %v875 = vand.u32 %v863, 2147483648
        %v876 = vor.u32 1.1754944e-38, %v875
        %v877 = vsel %vm874, %v876, %v872
        %v878 = vmul.f32 %v853, %v877
        %v879 = vmin.f32 %v878, 1.0
        %v880 = vmax.f32 %v879, -1.0
        %v881 = vmul.f32 %v631, %v631
        %v882 = vmin.f32 16.0, %v881
        %v883 = vmul.f32 %v882, 2.1237322e-06
        %v884 = vadd.f32 %v883, 0.00028619796
        %v885 = vmul.f32 %v882, %v884
        %v886 = vadd.f32 %v885, 0.0036580483
        %v887 = vmul.f32 %v882, %v886
        %v888 = vadd.f32 %v887, 0.05243302
        %v889 = vmul.f32 %v882, %v888
        %v890 = vadd.f32 %v889, 0.18741608
        %v891 = vmul.f32 %v882, %v890
        %v892 = vadd.f32 %v891, 1.1283791
        %v893 = vmul.f32 %v631, %v892
        %v894 = vmul.f32 %v882, 3.8918573e-05
        %v895 = vadd.f32 %v894, 0.001143296
        %v896 = vmul.f32 %v882, %v895
        %v897 = vadd.f32 %v896, 0.014752088
        %v898 = vmul.f32 %v882, %v897
        %v899 = vadd.f32 %v898, 0.112945676
        %v900 = vmul.f32 %v882, %v899
        %v901 = vadd.f32 %v900, 0.4994258
        %v902 = vmul.f32 %v882, %v901
        %v903 = vadd.f32 %v902, 1.0
        %v904 = vrcp.pop %v903
        %v905 = vmul.f32 %v903, %v904
        %v906 = vsub.f32 1.0, %v905
        %v907 = vmul.f32 %v904, %v906
        %v908 = vadd.f32 %v904, %v907
        %vm909 = vweird.f32 %v903
        %vm910 = vweird.f32 %v904
        %vm911 = vmor %vm909, %vm910
        %v912 = vsel %vm911, %v904, %v908
        %v913 = vand.u32 2147483647, %v903
        %vm914 = vcmp.eq.f32.partialorder %v913, 8.507059e+37
        %v915 = vand.u32 %v903, 2147483648
        %v916 = vor.u32 1.1754944e-38, %v915
        %v917 = vsel %vm914, %v916, %v912
        %v918 = vmul.f32 %v893, %v917
        %v919 = vmin.f32 %v918, 1.0
        %v920 = vmax.f32 %v919, -1.0
        %v921 = vmul.f32 %v632, %v632
        %v922 = vmin.f32 16.0, %v921
        %v923 = vmul.f32 %v922, 2.1237322e-06
        %v924 = vadd.f32 %v923, 0.00028619796
        %v925 = vmul.f32 %v922, %v924
        %v926 = vadd.f32 %v925, 0.0036580483
        %v927 = vmul.f32 %v922, %v926
        %v928 = vadd.f32 %v927, 0.05243302
        %v929 = vmul.f32 %v922, %v928
        %v930 = vadd.f32 %v929, 0.18741608
        %v931 = vmul.f32 %v922, %v930
        %v932 = vadd.f32 %v931, 1.1283791
        %v933 = vmul.f32 %v632, %v932
        %v934 = vmul.f32 %v922, 3.8918573e-05
        %v935 = vadd.f32 %v934, 0.001143296
        %v936 = vmul.f32 %v922, %v935
        %v937 = vadd.f32 %v936, 0.014752088
        %v938 = vmul.f32 %v922, %v937
        %v939 = vadd.f32 %v938, 0.112945676
        %v940 = vmul.f32 %v922, %v939
        %v941 = vadd.f32 %v940, 0.4994258
        %v942 = vmul.f32 %v922, %v941
        %v943 = vadd.f32 %v942, 1.0
        %v944 = vrcp.pop %v943
        %v945 = vmul.f32 %v943, %v944
        %v946 = vsub.f32 1.0, %v945
        %v947 = vmul.f32 %v944, %v946
        %v948 = vadd.f32 %v944, %v947
        %vm949 = vweird.f32 %v943
        %vm950 = vweird.f32 %v944
        %vm951 = vmor %vm949, %vm950
        %v952 = vsel %vm951, %v944, %v948
        %v953 = vand.u32 2147483647, %v943
        %vm954 = vcmp.eq.f32.partialorder %v953, 8.507059e+37
        %v955 = vand.u32 %v943, 2147483648
        %v956 = vor.u32 1.1754944e-38, %v955
        %v957 = vsel %vm954, %v956, %v952
        %v958 = vmul.f32 %v933, %v957
        %v959 = vmin.f32 %v958, 1.0
        %v960 = vmax.f32 %v959, -1.0
        %v961 = vmul.f32 %v633, %v633
        %v962 = vmin.f32 16.0, %v961
        %v963 = vmul.f32 %v962, 2.1237322e-06
        %v964 = vadd.f32 %v963, 0.00028619796
        %v965 = vmul.f32 %v962, %v964
        %v966 = vadd.f32 %v965, 0.0036580483
        %v967 = vmul.f32 %v962, %v966
        %v968 = vadd.f32 %v967, 0.05243302
        %v969 = vmul.f32 %v962, %v968
        %v970 = vadd.f32 %v969, 0.18741608
        %v971 = vmul.f32 %v962, %v970
        %v972 = vadd.f32 %v971, 1.1283791
        %v973 = vmul.f32 %v633, %v972
        %v974 = vmul.f32 %v962, 3.8918573e-05
        %v975 = vadd.f32 %v974, 0.001143296
        %v976 = vmul.f32 %v962, %v975
        %v977 = vadd.f32 %v976, 0.014752088
        %v978 = vmul.f32 %v962, %v977
        %v979 = vadd.f32 %v978, 0.112945676
        %v980 = vmul.f32 %v962, %v979
        %v981 = vadd.f32 %v980, 0.4994258
        %v982 = vmul.f32 %v962, %v981
        %v983 = vadd.f32 %v982, 1.0
        %v984 = vrcp.pop %v983
        %v985 = vmul.f32 %v983, %v984
        %v986 = vsub.f32 1.0, %v985
        %v987 = vmul.f32 %v984, %v986
        %v988 = vadd.f32 %v984, %v987
        %vm989 = vweird.f32 %v983
        %vm990 = vweird.f32 %v984
        %vm991 = vmor %vm989, %vm990
        %v992 = vsel %vm991, %v984, %v988
        %v993 = vand.u32 2147483647, %v983
        %vm994 = vcmp.eq.f32.partialorder %v993, 8.507059e+37
        %v995 = vand.u32 %v983, 2147483648
        %v996 = vor.u32 1.1754944e-38, %v995
        %v997 = vsel %vm994, %v996, %v992
        %v998 = vmul.f32 %v973, %v997
        %v999 = vmin.f32 %v998, 1.0
        %v1000 = vmax.f32 %v999, -1.0
        %v1001 = vmul.f32 %v634, %v634
        %v1002 = vmin.f32 16.0, %v1001
        %v1003 = vmul.f32 %v1002, 2.1237322e-06
        %v1004 = vadd.f32 %v1003, 0.00028619796
        %v1005 = vmul.f32 %v1002, %v1004
        %v1006 = vadd.f32 %v1005, 0.0036580483
        %v1007 = vmul.f32 %v1002, %v1006
        %v1008 = vadd.f32 %v1007, 0.05243302
        %v1009 = vmul.f32 %v1002, %v1008
        %v1010 = vadd.f32 %v1009, 0.18741608
        %v1011 = vmul.f32 %v1002, %v1010
        %v1012 = vadd.f32 %v1011, 1.1283791
        %v1013 = vmul.f32 %v634, %v1012
        %v1014 = vmul.f32 %v1002, 3.8918573e-05
        %v1015 = vadd.f32 %v1014, 0.001143296
        %v1016 = vmul.f32 %v1002, %v1015
        %v1017 = vadd.f32 %v1016, 0.014752088
        %v1018 = vmul.f32 %v1002, %v1017
        %v1019 = vadd.f32 %v1018, 0.112945676
        %v1020 = vmul.f32 %v1002, %v1019
        %v1021 = vadd.f32 %v1020, 0.4994258
        %v1022 = vmul.f32 %v1002, %v1021
        %v1023 = vadd.f32 %v1022, 1.0
        %v1024 = vrcp.pop %v1023
        %v1025 = vmul.f32 %v1023, %v1024
        %v1026 = vsub.f32 1.0, %v1025
        %v1027 = vmul.f32 %v1024, %v1026
        %v1028 = vadd.f32 %v1024, %v1027
        %vm1029 = vweird.f32 %v1023
        %vm1030 = vweird.f32 %v1024
        %vm1031 = vmor %vm1029, %vm1030
        %v1032 = vsel %vm1031, %v1024, %v1028
        %v1033 = vand.u32 2147483647, %v1023
        %vm1034 = vcmp.eq.f32.partialorder %v1033, 8.507059e+37
        %v1035 = vand.u32 %v1023, 2147483648
        %v1036 = vor.u32 1.1754944e-38, %v1035
        %v1037 = vsel %vm1034, %v1036, %v1032
        %v1038 = vmul.f32 %v1013, %v1037
        %v1039 = vmin.f32 %v1038, 1.0
        %v1040 = vmax.f32 %v1039, -1.0
        %v1041 = vmul.f32 %v635, %v635
        %v1042 = vmin.f32 16.0, %v1041
        %v1043 = vmul.f32 %v1042, 2.1237322e-06
        %v1044 = vadd.f32 %v1043, 0.00028619796
        %v1045 = vmul.f32 %v1042, %v1044
        %v1046 = vadd.f32 %v1045, 0.0036580483
        %v1047 = vmul.f32 %v1042, %v1046
        %v1048 = vadd.f32 %v1047, 0.05243302
        %v1049 = vmul.f32 %v1042, %v1048
        %v1050 = vadd.f32 %v1049, 0.18741608
        %v1051 = vmul.f32 %v1042, %v1050
        %v1052 = vadd.f32 %v1051, 1.1283791
        %v1053 = vmul.f32 %v635, %v1052
        %v1054 = vmul.f32 %v1042, 3.8918573e-05
        %v1055 = vadd.f32 %v1054, 0.001143296
        %v1056 = vmul.f32 %v1042, %v1055
        %v1057 = vadd.f32 %v1056, 0.014752088
        %v1058 = vmul.f32 %v1042, %v1057
        %v1059 = vadd.f32 %v1058, 0.112945676
        %v1060 = vmul.f32 %v1042, %v1059
        %v1061 = vadd.f32 %v1060, 0.4994258
        %v1062 = vmul.f32 %v1042, %v1061
        %v1063 = vadd.f32 %v1062, 1.0
        %v1064 = vrcp.pop %v1063
        %v1065 = vmul.f32 %v1063, %v1064
        %v1066 = vsub.f32 1.0, %v1065
        %v1067 = vmul.f32 %v1064, %v1066
        %v1068 = vadd.f32 %v1064, %v1067
        %vm1069 = vweird.f32 %v1063
        %vm1070 = vweird.f32 %v1064
        %vm1071 = vmor %vm1069, %vm1070
        %v1072 = vsel %vm1071, %v1064, %v1068
        %v1073 = vand.u32 2147483647, %v1063
        %vm1074 = vcmp.eq.f32.partialorder %v1073, 8.507059e+37
        %v1075 = vand.u32 %v1063, 2147483648
        %v1076 = vor.u32 1.1754944e-38, %v1075
        %v1077 = vsel %vm1074, %v1076, %v1072
        %v1078 = vmul.f32 %v1053, %v1077
        %v1079 = vmin.f32 %v1078, 1.0
        %v1080 = vmax.f32 %v1079, -1.0
        %v1081 = vmul.f32 %v636, %v636
        %v1082 = vmin.f32 16.0, %v1081
        %v1083 = vmul.f32 %v1082, 2.1237322e-06
        %v1084 = vadd.f32 %v1083, 0.00028619796
        %v1085 = vmul.f32 %v1082, %v1084
        %v1086 = vadd.f32 %v1085, 0.0036580483
        %v1087 = vmul.f32 %v1082, %v1086
        %v1088 = vadd.f32 %v1087, 0.05243302
        %v1089 = vmul.f32 %v1082, %v1088
        %v1090 = vadd.f32 %v1089, 0.18741608
        %v1091 = vmul.f32 %v1082, %v1090
        %v1092 = vadd.f32 %v1091, 1.1283791
        %v1093 = vmul.f32 %v636, %v1092
        %v1094 = vmul.f32 %v1082, 3.8918573e-05
        %v1095 = vadd.f32 %v1094, 0.001143296
        %v1096 = vmul.f32 %v1082, %v1095
        %v1097 = vadd.f32 %v1096, 0.014752088
        %v1098 = vmul.f32 %v1082, %v1097
        %v1099 = vadd.f32 %v1098, 0.112945676
        %v1100 = vmul.f32 %v1082, %v1099
        %v1101 = vadd.f32 %v1100, 0.4994258
        %v1102 = vmul.f32 %v1082, %v1101
        %v1103 = vadd.f32 %v1102, 1.0
        %v1104 = vrcp.pop %v1103
        %v1105 = vmul.f32 %v1103, %v1104
        %v1106 = vsub.f32 1.0, %v1105
        %v1107 = vmul.f32 %v1104, %v1106
        %v1108 = vadd.f32 %v1104, %v1107
        %vm1109 = vweird.f32 %v1103
        %vm1110 = vweird.f32 %v1104
        %vm1111 = vmor %vm1109, %vm1110
        %v1112 = vsel %vm1111, %v1104, %v1108
        %v1113 = vand.u32 2147483647, %v1103
        %vm1114 = vcmp.eq.f32.partialorder %v1113, 8.507059e+37
        %v1115 = vand.u32 %v1103, 2147483648
        %v1116 = vor.u32 1.1754944e-38, %v1115
        %v1117 = vsel %vm1114, %v1116, %v1112
        %v1118 = vmul.f32 %v1093, %v1117
        %v1119 = vmin.f32 %v1118, 1.0
        %v1120 = vmax.f32 %v1119, -1.0
        %v1121 = vmul.f32 %v637, %v637
        %v1122 = vmin.f32 16.0, %v1121
        %v1123 = vmul.f32 %v1122, 2.1237322e-06
        %v1124 = vadd.f32 %v1123, 0.00028619796
        %v1125 = vmul.f32 %v1122, %v1124
        %v1126 = vadd.f32 %v1125, 0.0036580483
        %v1127 = vmul.f32 %v1122, %v1126
        %v1128 = vadd.f32 %v1127, 0.05243302
        %v1129 = vmul.f32 %v1122, %v1128
        %v1130 = vadd.f32 %v1129, 0.18741608
        %v1131 = vmul.f32 %v1122, %v1130
        %v1132 = vadd.f32 %v1131, 1.1283791
        %v1133 = vmul.f32 %v637, %v1132
        %v1134 = vmul.f32 %v1122, 3.8918573e-05
        %v1135 = vadd.f32 %v1134, 0.001143296
        %v1136 = vmul.f32 %v1122, %v1135
        %v1137 = vadd.f32 %v1136, 0.014752088
        %v1138 = vmul.f32 %v1122, %v1137
        %v1139 = vadd.f32 %v1138, 0.112945676
        %v1140 = vmul.f32 %v1122, %v1139
        %v1141 = vadd.f32 %v1140, 0.4994258
        %v1142 = vmul.f32 %v1122, %v1141
        %v1143 = vadd.f32 %v1142, 1.0
        %v1144 = vrcp.pop %v1143
        %v1145 = vmul.f32 %v1143, %v1144
        %v1146 = vsub.f32 1.0, %v1145
        %v1147 = vmul.f32 %v1144, %v1146
        %v1148 = vadd.f32 %v1144, %v1147
        %vm1149 = vweird.f32 %v1143
        %vm1150 = vweird.f32 %v1144
        %vm1151 = vmor %vm1149, %vm1150
        %v1152 = vsel %vm1151, %v1144, %v1148
        %v1153 = vand.u32 2147483647, %v1143
        %vm1154 = vcmp.eq.f32.partialorder %v1153, 8.507059e+37
        %v1155 = vand.u32 %v1143, 2147483648
        %v1156 = vor.u32 1.1754944e-38, %v1155
        %v1157 = vsel %vm1154, %v1156, %v1152
        %v1158 = vmul.f32 %v1133, %v1157
        %v1159 = vmin.f32 %v1158, 1.0
        %v1160 = vmax.f32 %v1159, -1.0
        %v1161 = vmul.f32 %v638, %v638
        %v1162 = vmin.f32 16.0, %v1161
        %v1163 = vmul.f32 %v1162, 2.1237322e-06
        %v1164 = vadd.f32 %v1163, 0.00028619796
        %v1165 = vmul.f32 %v1162, %v1164
        %v1166 = vadd.f32 %v1165, 0.0036580483
        %v1167 = vmul.f32 %v1162, %v1166
        %v1168 = vadd.f32 %v1167, 0.05243302
        %v1169 = vmul.f32 %v1162, %v1168
        %v1170 = vadd.f32 %v1169, 0.18741608
        %v1171 = vmul.f32 %v1162, %v1170
        %v1172 = vadd.f32 %v1171, 1.1283791
        %v1173 = vmul.f32 %v638, %v1172
        %v1174 = vmul.f32 %v1162, 3.8918573e-05
        %v1175 = vadd.f32 %v1174, 0.001143296
        %v1176 = vmul.f32 %v1162, %v1175
        %v1177 = vadd.f32 %v1176, 0.014752088
        %v1178 = vmul.f32 %v1162, %v1177
        %v1179 = vadd.f32 %v1178, 0.112945676
        %v1180 = vmul.f32 %v1162, %v1179
        %v1181 = vadd.f32 %v1180, 0.4994258
        %v1182 = vmul.f32 %v1162, %v1181
        %v1183 = vadd.f32 %v1182, 1.0
        %v1184 = vrcp.pop %v1183
        %v1185 = vmul.f32 %v1183, %v1184
        %v1186 = vsub.f32 1.0, %v1185
        %v1187 = vmul.f32 %v1184, %v1186
        %v1188 = vadd.f32 %v1184, %v1187
        %vm1189 = vweird.f32 %v1183
        %vm1190 = vweird.f32 %v1184
        %vm1191 = vmor %vm1189, %vm1190
        %v1192 = vsel %vm1191, %v1184, %v1188
        %v1193 = vand.u32 2147483647, %v1183
        %vm1194 = vcmp.eq.f32.partialorder %v1193, 8.507059e+37
        %v1195 = vand.u32 %v1183, 2147483648
        %v1196 = vor.u32 1.1754944e-38, %v1195
        %v1197 = vsel %vm1194, %v1196, %v1192
        %v1198 = vmul.f32 %v1173, %v1197
        %v1199 = vmin.f32 %v1198, 1.0
        %v1200 = vmax.f32 %v1199, -1.0
        %v1201 = vmul.f32 %v639, %v639
        %v1202 = vmin.f32 16.0, %v1201
        %v1203 = vmul.f32 %v1202, 2.1237322e-06
        %v1204 = vadd.f32 %v1203, 0.00028619796
        %v1205 = vmul.f32 %v1202, %v1204
        %v1206 = vadd.f32 %v1205, 0.0036580483
        %v1207 = vmul.f32 %v1202, %v1206
        %v1208 = vadd.f32 %v1207, 0.05243302
        %v1209 = vmul.f32 %v1202, %v1208
        %v1210 = vadd.f32 %v1209, 0.18741608
        %v1211 = vmul.f32 %v1202, %v1210
        %v1212 = vadd.f32 %v1211, 1.1283791
        %v1213 = vmul.f32 %v639, %v1212
        %v1214 = vmul.f32 %v1202, 3.8918573e-05
        %v1215 = vadd.f32 %v1214, 0.001143296
        %v1216 = vmul.f32 %v1202, %v1215
        %v1217 = vadd.f32 %v1216, 0.014752088
        %v1218 = vmul.f32 %v1202, %v1217
        %v1219 = vadd.f32 %v1218, 0.112945676
        %v1220 = vmul.f32 %v1202, %v1219
        %v1221 = vadd.f32 %v1220, 0.4994258
        %v1222 = vmul.f32 %v1202, %v1221
        %v1223 = vadd.f32 %v1222, 1.0
        %v1224 = vrcp.pop %v1223
        %v1225 = vmul.f32 %v1223, %v1224
        %v1226 = vsub.f32 1.0, %v1225
        %v1227 = vmul.f32 %v1224, %v1226
        %v1228 = vadd.f32 %v1224, %v1227
        %vm1229 = vweird.f32 %v1223
        %vm1230 = vweird.f32 %v1224
        %vm1231 = vmor %vm1229, %vm1230
        %v1232 = vsel %vm1231, %v1224, %v1228
        %v1233 = vand.u32 2147483647, %v1223
        %vm1234 = vcmp.eq.f32.partialorder %v1233, 8.507059e+37
        %v1235 = vand.u32 %v1223, 2147483648
        %v1236 = vor.u32 1.1754944e-38, %v1235
        %v1237 = vsel %vm1234, %v1236, %v1232
        %v1238 = vmul.f32 %v1213, %v1237
        %v1239 = vmin.f32 %v1238, 1.0
        %v1240 = vmax.f32 %v1239, -1.0
        %v1241 = vmul.f32 %v640, %v640
        %v1242 = vmin.f32 16.0, %v1241
        %v1243 = vmul.f32 %v1242, 2.1237322e-06
        %v1244 = vadd.f32 %v1243, 0.00028619796
        %v1245 = vmul.f32 %v1242, %v1244
        %v1246 = vadd.f32 %v1245, 0.0036580483
        %v1247 = vmul.f32 %v1242, %v1246
        %v1248 = vadd.f32 %v1247, 0.05243302
        %v1249 = vmul.f32 %v1242, %v1248
        %v1250 = vadd.f32 %v1249, 0.18741608
        %v1251 = vmul.f32 %v1242, %v1250
        %v1252 = vadd.f32 %v1251, 1.1283791
        %v1253 = vmul.f32 %v640, %v1252
        %v1254 = vmul.f32 %v1242, 3.8918573e-05
        %v1255 = vadd.f32 %v1254, 0.001143296
        %v1256 = vmul.f32 %v1242, %v1255
        %v1257 = vadd.f32 %v1256, 0.014752088
        %v1258 = vmul.f32 %v1242, %v1257
        %v1259 = vadd.f32 %v1258, 0.112945676
        %v1260 = vmul.f32 %v1242, %v1259
        %v1261 = vadd.f32 %v1260, 0.4994258
        %v1262 = vmul.f32 %v1242, %v1261
        %v1263 = vadd.f32 %v1262, 1.0
        %v1264 = vrcp.pop %v1263
        %v1265 = vmul.f32 %v1263, %v1264
        %v1266 = vsub.f32 1.0, %v1265
        %v1267 = vmul.f32 %v1264, %v1266
        %v1268 = vadd.f32 %v1264, %v1267
        %vm1269 = vweird.f32 %v1263
        %vm1270 = vweird.f32 %v1264
        %vm1271 = vmor %vm1269, %vm1270
        %v1272 = vsel %vm1271, %v1264, %v1268
        %v1273 = vand.u32 2147483647, %v1263
        %vm1274 = vcmp.eq.f32.partialorder %v1273, 8.507059e+37
        %v1275 = vand.u32 %v1263, 2147483648
        %v1276 = vor.u32 1.1754944e-38, %v1275
        %v1277 = vsel %vm1274, %v1276, %v1272
        %v1278 = vmul.f32 %v1253, %v1277
        %v1279 = vmin.f32 %v1278, 1.0
        %v1280 = vmax.f32 %v1279, -1.0
        %v1281 = vadd.f32 %v680, 1.0
        %v1282 = vadd.f32 %v720, 1.0
        %v1283 = vadd.f32 %v760, 1.0
        %v1284 = vadd.f32 %v800, 1.0
        %v1285 = vadd.f32 %v840, 1.0
        %v1286 = vadd.f32 %v880, 1.0
        %v1287 = vadd.f32 %v920, 1.0
        %v1288 = vadd.f32 %v960, 1.0
        %v1289 = vadd.f32 %v1000, 1.0
        %v1290 = vadd.f32 %v1040, 1.0
        %v1291 = vadd.f32 %v1080, 1.0
        %v1292 = vadd.f32 %v1120, 1.0
        %v1293 = vadd.f32 %v1160, 1.0
        %v1294 = vadd.f32 %v1200, 1.0
        %v1295 = vadd.f32 %v1240, 1.0
        %v1296 = vadd.f32 %v1280, 1.0
        %v1297 = vmul.f32 %v609, %v1281
        %v1298 = vmul.f32 %v610, %v1282
        %v1299 = vmul.f32 %v611, %v1283
        %v1300 = vmul.f32 %v612, %v1284
        %v1301 = vmul.f32 %v613, %v1285
        %v1302 = vmul.f32 %v614, %v1286
        %v1303 = vmul.f32 %v615, %v1287
        %v1304 = vmul.f32 %v616, %v1288
        %v1305 = vmul.f32 %v617, %v1289
        %v1306 = vmul.f32 %v618, %v1290
        %v1307 = vmul.f32 %v619, %v1291
        %v1308 = vmul.f32 %v620, %v1292
        %v1309 = vmul.f32 %v621, %v1293
        %v1310 = vmul.f32 %v622, %v1294
        %v1311 = vmul.f32 %v623, %v1295
        %v1312 = vmul.f32 %v624, %v1296
        %v1313 = vmul.f32 %v453, %v1297
        %v1314 = vmul.f32 %v455, %v1298
        %v1315 = vmul.f32 %v458, %v1299
        %v1316 = vmul.f32 %v460, %v1300
        %v1317 = vmul.f32 %v463, %v1301
        %v1318 = vmul.f32 %v465, %v1302
        %v1319 = vmul.f32 %v468, %v1303
        %v1320 = vmul.f32 %v470, %v1304
        %v1321 = vmul.f32 %v473, %v1305
        %v1322 = vmul.f32 %v475, %v1306
        %v1323 = vmul.f32 %v478, %v1307
        %v1324 = vmul.f32 %v480, %v1308
        %v1325 = vmul.f32 %v483, %v1309
        %v1326 = vmul.f32 %v485, %v1310
        %v1327 = vmul.f32 %v488, %v1311
        %v1328 = vmul.f32 %v490, %v1312
        %v1329 = vpack.c.bf16 %v1314, %v1313
        %v1330 = vpack.c.bf16 %v1316, %v1315
        %v1331 = vpack.c.bf16 %v1318, %v1317
        %v1332 = vpack.c.bf16 %v1320, %v1319
        %v1333 = vpack.c.bf16 %v1322, %v1321
        %v1334 = vpack.c.bf16 %v1324, %v1323
        %v1335 = vpack.c.bf16 %v1326, %v1325
        %v1336 = vpack.c.bf16 %v1328, %v1327
        %v1337 = vld [vmem:[#allocation8] sm:$0xf]
        %v1338 = vld [vmem:[#allocation8 + $0x4] sm:$0xf]
        %v1339 = vld [vmem:[#allocation8 + $0x8] sm:$0xf]
        %v1340 = vld [vmem:[#allocation8 + $0xc] sm:$0xf]
        %v1341 = vld [vmem:[#allocation8 + $0x10] sm:$0xf]
        %v1342 = vld [vmem:[#allocation8 + $0x14] sm:$0xf]
        %v1343 = vld [vmem:[#allocation8 + $0x18] sm:$0xf]
        %v1344 = vld [vmem:[#allocation8 + $0x1c] sm:$0xf]
        %v1345 = vld [vmem:[#allocation8 + $0x20] sm:$0xf]
        %v1346 = vld [vmem:[#allocation8 + $0x24] sm:$0xf]
        %v1347 = vld [vmem:[#allocation8 + $0x28] sm:$0xf]
        %v1348 = vld [vmem:[#allocation8 + $0x2c] sm:$0xf]
        %v1349 = vld [vmem:[#allocation8 + $0x30] sm:$0xf]
        %v1350 = vld [vmem:[#allocation8 + $0x34] sm:$0xf]
        %v1351 = vld [vmem:[#allocation8 + $0x38] sm:$0xf]
        %v1352 = vld [vmem:[#allocation8 + $0x3c] sm:$0xf]
        %v1353 = vld [vmem:[%s6] sm:$0x1]
        %v1355 = vperm.slane %v1353, 0
        %v1373 = vunpack.c.l.b16 %v1337
        %v1374 = vunpack.c.l.b16 %v1338
        %v1375 = vunpack.c.l.b16 %v1339
        %v1376 = vunpack.c.l.b16 %v1340
        %v1377 = vunpack.c.l.b16 %v1341
        %v1378 = vunpack.c.l.b16 %v1342
        %v1379 = vunpack.c.l.b16 %v1343
        %v1380 = vunpack.c.l.b16 %v1344
        %v1381 = vunpack.c.l.b16 %v1345
        %v1382 = vunpack.c.l.b16 %v1346
        %v1383 = vunpack.c.l.b16 %v1347
        %v1384 = vunpack.c.l.b16 %v1348
        %v1385 = vunpack.c.l.b16 %v1349
        %v1386 = vunpack.c.l.b16 %v1350
        %v1387 = vunpack.c.l.b16 %v1351
        %v1388 = vunpack.c.l.b16 %v1352
        %v1389 = vpack.c.b16 %v1374, %v1373
        %v1390 = vpack.c.b16 %v1376, %v1375
        %v1391 = vpack.c.b16 %v1378, %v1377
        %v1392 = vpack.c.b16 %v1380, %v1379
        %v1393 = vpack.c.b16 %v1382, %v1381
        %v1394 = vpack.c.b16 %v1384, %v1383
        %v1395 = vpack.c.b16 %v1386, %v1385
        %v1396 = vpack.c.b16 %v1388, %v1387
        %1405 = vmatpush.bf16.msra.mxu0 %v1396
        %1406 = vmatpush.bf16.msra.mxu0 %v1395
        %1407 = vmatpush.bf16.msra.mxu0 %v1394
        %1408 = vmatpush.bf16.msra.mxu0 %v1393
        %1409 = vmatpush.bf16.msra.mxu0 %v1392
        %1410 = vmatpush.bf16.msra.mxu0 %v1391
        %1411 = vmatpush.bf16.msra.mxu0 %v1390
        %1412 = vmatpush.bf16.msra.mxu0 %v1389
        %1413 = vmatmul.bf16.gmra.mxu0 %v1329
        %v1414 = vpop.f32.mrf.mxu0
        %v1415 = vadd.f32 %v1355, %v1414
        %v1416 = vpop.f32.mrf.mxu0
        %v1417 = vadd.f32 %v1355, %v1416
        %1418 = vmatmul.bf16.gmra.mxu0 %v1330
        %v1419 = vpop.f32.mrf.mxu0
        %v1420 = vadd.f32 %v1355, %v1419
        %v1421 = vpop.f32.mrf.mxu0
        %v1422 = vadd.f32 %v1355, %v1421
        %1423 = vmatmul.bf16.gmra.mxu0 %v1331
        %v1424 = vpop.f32.mrf.mxu0
        %v1425 = vadd.f32 %v1355, %v1424
        %v1426 = vpop.f32.mrf.mxu0
        %v1427 = vadd.f32 %v1355, %v1426
        %1428 = vmatmul.bf16.gmra.mxu0 %v1332
        %v1429 = vpop.f32.mrf.mxu0
        %v1430 = vadd.f32 %v1355, %v1429
        %v1431 = vpop.f32.mrf.mxu0
        %v1432 = vadd.f32 %v1355, %v1431
        %1433 = vmatmul.bf16.gmra.mxu0 %v1333
        %v1434 = vpop.f32.mrf.mxu0
        %v1435 = vadd.f32 %v1355, %v1434
        %v1436 = vpop.f32.mrf.mxu0
        %v1437 = vadd.f32 %v1355, %v1436
        %1438 = vmatmul.bf16.gmra.mxu0 %v1334
        %v1439 = vpop.f32.mrf.mxu0
        %v1440 = vadd.f32 %v1355, %v1439
        %v1441 = vpop.f32.mrf.mxu0
        %v1442 = vadd.f32 %v1355, %v1441
        %1443 = vmatmul.bf16.gmra.mxu0 %v1335
        %v1444 = vpop.f32.mrf.mxu0
        %v1445 = vadd.f32 %v1355, %v1444
        %v1446 = vpop.f32.mrf.mxu0
        %v1447 = vadd.f32 %v1355, %v1446
        %1448 = vmatmul.bf16.gmra.mxu0 %v1336
        %v1449 = vpop.f32.mrf.mxu0
        %v1450 = vadd.f32 %v1355, %v1449
        %v1451 = vpop.f32.mrf.mxu0
        %v1452 = vadd.f32 %v1355, %v1451
        %1453 = vdwg.mxu0
        %1454 = vst [vmem:[%s348] sm:$0xff] %v1415
        %1455 = vst [vmem:[%s348 + $0x8] sm:$0xff] %v1417
        %1456 = vst [vmem:[%s348 + $0x10] sm:$0xff] %v1420
        %1457 = vst [vmem:[%s348 + $0x18] sm:$0xff] %v1422
        %1458 = vst [vmem:[%s348 + $0x20] sm:$0xff] %v1425
        %1459 = vst [vmem:[%s348 + $0x28] sm:$0xff] %v1427
        %1460 = vst [vmem:[%s348 + $0x30] sm:$0xff] %v1430
        %1461 = vst [vmem:[%s348 + $0x38] sm:$0xff] %v1432
        %1462 = vst [vmem:[%s348 + $0x40] sm:$0xff] %v1435
        %1463 = vst [vmem:[%s348 + $0x48] sm:$0xff] %v1437
        %1464 = vst [vmem:[%s348 + $0x50] sm:$0xff] %v1440
        %1465 = vst [vmem:[%s348 + $0x58] sm:$0xff] %v1442
        %1466 = vst [vmem:[%s348 + $0x60] sm:$0xff] %v1445
        %1467 = vst [vmem:[%s348 + $0x68] sm:$0xff] %v1447
        %1468 = vst [vmem:[%s348 + $0x70] sm:$0xff] %v1450
        %1469 = vst [vmem:[%s348 + $0x78] sm:$0xff] %v1452
        %s1470 = sand.u32 %s186, 1
        %s1471 = scalar_lea.sflag [#allocation4], %s1470
        %s1472 = sand.u32 %s186, 1
        %s1473 = smul.addr %s1472, 128
        %s1474 = scalar_lea.vmem [#allocation10], %s1473
        // Predicated region
        $region65: #{tpu_custom_call.1} parent=47 // pred_check
          %p1475 = pneg %p196
        $region66: #{tpu_custom_call.1} parent=47 // pred_check_branch
          %1477 = sbr.rel (%p1475) target = $region68
        $region67: #{tpu_custom_call.1} parent=47 // pred_region
          %s1478 = smul.u32 16, %s26
          %1480 = vsyncadd %s1471, 0
          %s1481 = smul.addr %s1478, 8
          %s1482 = scalar_lea.hbm %s7, %s1481
          %s1483 = sshll.u32 %s1474, 4
          %s1484 = int_to_ptr.vmem [resolvable:$true] %s1483
          %s1485 = sshll.u32 %s1482, 4
          %s1486 = int_to_ptr.hbm [resolvable:$true] %s1485
          %1491 = dma.vmem_to_hbm [thread:$0]  %s1484, 2048, %s1486, %s1471, 128, 128, 8
        $region68: #{tpu_custom_call.1} parent=47 // pred_fallthru
          _
      $region48: #{tpu_custom_call.1} parent=5 // pred_fallthru
        _
      %p1492 = scmp.le.s32.totalorder 2, %s21
      // Predicated region
      $region69: #{tpu_custom_call.1} parent=5 // pred_check
        %p1493 = pneg %p1492
      $region70: #{tpu_custom_call.1} parent=5 // pred_check_branch
        %1495 = sbr.rel (%p1493) target = $region72
      $region71: #{tpu_custom_call.1} parent=5 // pred_region
        %s1496 = ssub.s32 %s21, 2
        // Predicated region
        $region73: #{tpu_custom_call.1} parent=71 // pred_check
          %p1497 = pneg %p202
        $region74: #{tpu_custom_call.1} parent=71 // pred_check_branch
          %1499 = sbr.rel (%p1497) target = $region76
        $region75: #{tpu_custom_call.1} parent=71 // pred_region
          %s1500 = sand.u32 %s187, 1
          %s1501 = scalar_lea.sflag [#allocation4], %s1500
          %s1502 = sand.u32 %s187, 1
          %s1503 = smul.addr %s1502, 128
          %s1504 = scalar_lea.vmem [#allocation10], %s1503
          %1506 = dma.done %s1501, 2048
        $region76: #{tpu_custom_call.1} parent=71 // pred_fallthru
          _
      $region72: #{tpu_custom_call.1} parent=5 // pred_fallthru
        _
    $region6: #{tpu_custom_call.1} parent=1 // loop_footer
      %s25 = sadd.s32 1, %s21
    $region7: #{tpu_custom_call.1} parent=1 // loop_footer_branch
      %20 = sbr.rel target = $region3
    $region8: #{tpu_custom_call.1} parent=1 // loop_exit
      _
    %1507 = vsyncpa [#allocation3], 1
    %s1508 = scalar_lea.sflag [#allocation3], 1
    %1509 = vsyncpa %s1508, 1
    %1510 = vsyncpa [#allocation6], 1
    %1511 = vsyncpa [#allocation9], 1
    %1512 = vsyncpa [#allocation4], 1
    %s1513 = scalar_lea.sflag [#allocation4], 1
    %1514 = vsyncpa %s1513, 1

</llo_original>
